<compile_context>
chip_gen: v6e
topology: v6e:2x2x1
jax: 0.10.0
libtpu: 0.0.40
codegen_flags: <defaults>
</compile_context>

<pallas_src>
import functools

import jax
import jax.numpy as jnp
from jax import lax
from jax.experimental import pallas as pl
from jax.experimental.pallas import tpu as pltpu


def _round_up(x, m):
    return ((x + m - 1) // m) * m


def _vmem_budget_bytes():
    """Usable scoped-VMEM budget derived from the chip (generation-aware)."""
    try:
        cap = int(pltpu.get_tpu_info().vmem_capacity_bytes)  # 128 MiB v5e/v6e, 64 MiB v7x
    except Exception:
        cap = 64 * 1024 * 1024                               # conservative (v7x) fallback
    return (cap * 3) // 4                                    # headroom for compiler scratch


def _choose_block_units(n_units, bytes_per_unit, rows_per_unit, budget_bytes):
    """How many images go into one grid step.

    A block is legal if its sublane row count (bu * rows_per_unit) is 8-aligned
    or it spans the full array (full-extent blocks are always legal).  Among
    legal blocks take the largest whose working set fits the VMEM budget (big
    blocks amortise the ~0.35us/step pipeline overhead), but keep >=2 grid
    steps (v7x has two TensorCores) when a single step would still carry
    non-trivial work.
    """
    legal = [bu for bu in range(1, n_units + 1)
             if n_units % bu == 0
             and ((bu * rows_per_unit) % 8 == 0 or bu == n_units)]
    fitting = [bu for bu in legal if bu * bytes_per_unit <= budget_bytes]
    if not fitting:
        return min(legal)
    bu = max(fitting)
    if bu == n_units and bu * bytes_per_unit > (4 << 20):    # only split real work
        halved = [b for b in fitting if b <= bu // 2]
        if halved:
            bu = max(halved)
    return bu


# ---------------------------------------------------------------------------
# Fast path: fold the whole padded conv into one (C*H*W, C*H*W) matrix.
# ---------------------------------------------------------------------------

def _build_full_band(w_oihw, H, W, ph, pw):
    """(Cin*H*W, Cout*H*W) matrix of the zero-padded conv, NCHW-flat order."""
    Cout, Cin, KH, KW = w_oihw.shape
    kh_idx = jnp.arange(H)[:, None] - jnp.arange(H)[None, :] + ph      # (hi, ho)
    kw_idx = jnp.arange(W)[:, None] - jnp.arange(W)[None, :] + pw      # (wi, wo)
    valid = (((kh_idx >= 0) & (kh_idx < KH))[:, :, None, None]
             & ((kw_idx >= 0) & (kw_idx < KW))[None, None, :, :])      # (hi,ho,wi,wo)
    khs = jnp.clip(kh_idx, 0, KH - 1)
    kws = jnp.clip(kw_idx, 0, KW - 1)
    wt = jnp.transpose(w_oihw, (1, 0, 2, 3))                           # (Cin,Cout,KH,KW)
    band = wt[:, :, khs][..., kws]                                     # (Cin,Cout,hi,ho,wi,wo)
    band = jnp.where(valid[None, None], band, 0.0)
    band = jnp.transpose(band, (0, 2, 4, 1, 3, 5))                     # (ci,hi,wi,co,ho,wo)
    return band.reshape(Cin * H * W, Cout * H * W)


def _resblock_full_kernel(x_ref, w_ref, o_ref):
    """One grid step: (bn, F) x (F, F) matmul, ReLU, identity residual."""
    x = x_ref[...]
    fx = jnp.dot(x, w_ref[...], preferred_element_type=jnp.float32)
    o_ref[...] = (jnp.maximum(fx, 0.0) + x).astype(o_ref.dtype)


def _forward_full_band(x_nchw, w_oihw, ph, pw, budget):
    N, Cin, H, W = x_nchw.shape
    Cout = w_oihw.shape[0]
    F = Cin * H * W
    Fp = _round_up(F, 128)                       # lane-dense: multiple of 128

    # NCHW-flat activations: a pure reshape -> no transpose / extra HBM copy.
    x2d = x_nchw.reshape(N, F)
    band = _build_full_band(w_oihw, H, W, ph, pw)
    if Fp != F:
        x2d = jnp.pad(x2d, ((0, 0), (0, Fp - F)))
        band = jnp.pad(band, ((0, Fp - F), (0, Fp - F)))

    band_bytes = 2 * Fp * Fp * 4                 # the pipeline double-buffers the band
    per_image = 6 * Fp * 4                       # in/out (double-buffered) + temporaries
    bn = _choose_block_units(N, per_image, 1, budget - band_bytes)
    grid = (N // bn,)

    out2d = pl.pallas_call(
        _resblock_full_kernel,
        out_shape=jax.ShapeDtypeStruct((N, Fp), x_nchw.dtype),
        grid_spec=pltpu.PrefetchScalarGridSpec(
            num_scalar_prefetch=0,
            grid=grid,
            in_specs=[
                pl.BlockSpec((bn, Fp), lambda i: (i, 0)),
                # Constant index_map: the band stays resident across the grid.
                pl.BlockSpec((Fp, Fp), lambda i: (0, 0)),
            ],
            out_specs=pl.BlockSpec((bn, Fp), lambda i: (i, 0)),
        ),
        compiler_params=pltpu.CompilerParams(
            dimension_semantics=("parallel",),
            vmem_limit_bytes=budget,
        ),
    )(x2d, band)

    if Fp != F:
        out2d = out2d[:, :F]
    return out2d.reshape(N, Cout, H, W)


# ---------------------------------------------------------------------------
# General path: row-banded weights, KH taps fused into one matmul,
# H halo handled in-kernel with pltpu.roll + a multiplicative row mask.
# ---------------------------------------------------------------------------

def _build_row_band(w_oihw, W, ph, pw):
    """Fold the kw taps and the W zero-padding into (KH, W*Cin, W*Cout)."""
    Cout, Cin, KH, KW = w_oihw.shape
    w_hwio = jnp.transpose(w_oihw, (2, 3, 1, 0))                     # (KH, KW, Cin, Cout)
    kw_idx = jnp.arange(W)[:, None] - jnp.arange(W)[None, :] + pw    # (wi, wo)
    valid = (kw_idx >= 0) & (kw_idx < KW)
    kws = jnp.clip(kw_idx, 0, KW - 1)
    band = w_hwio[:, kws]                                            # (KH, wi, wo, Cin, Cout)
    band = jnp.where(valid[None, :, :, None, None], band, 0.0)
    band = jnp.transpose(band, (0, 1, 3, 2, 4))                      # (KH, wi, Cin, wo, Cout)
    return band.reshape(KH, W * Cin, W * Cout)


def _resblock_rows_kernel(x_ref, w_ref, o_ref, *, H, KH, ph):
    """One grid step: a block of whole images in lane-dense (rows, L) layout.

    x_ref: (MB, L), MB = bn*H rows; w_ref: (KH*L, L) fused banded weights;
    o_ref: (MB, L).
    """
    x = x_ref[...]
    MB = x.shape[0]
    h = lax.broadcasted_iota(jnp.int32, (MB, 1), 0) % H      # row index within image

    taps = []
    for kh in range(KH):
        s = kh - ph                                          # row shift of this tap
        if s == 0:
            taps.append(x)
        else:
            # xs[r] = x[(r + s) mod MB]: XLU rotate, no VMEM concatenate copies.
            xs = pltpu.roll(x, shift=-s, axis=0)
            # Rows whose shift crosses an image boundary (incl. the wrap) are
            # zeroed -> implicit H zero-padding.  One vmul instead of selects.
            mask = ((h + s >= 0) & (h + s < H)).astype(x.dtype)
            taps.append(xs * mask)

    xk = jnp.concatenate(taps, axis=1)                       # (MB, KH*L)
    fx = jnp.dot(xk, w_ref[...], preferred_element_type=jnp.float32)
    o_ref[...] = (jnp.maximum(fx, 0.0) + x).astype(o_ref.dtype)


def _forward_row_band(x_nchw, w_oihw, ph, pw, budget):
    N, Cin, H, W = x_nchw.shape
    Cout, _, KH, KW = w_oihw.shape
    L_in, L_out = W * Cin, W * Cout
    L = _round_up(max(L_in, L_out), 128)                     # lane-dense lane count

    # TODO(synk): keep activations NHWC end-to-end so these two transposes
    # (extra HBM round trips) fuse into the neighbouring layers.
    x2d = jnp.transpose(x_nchw, (0, 2, 3, 1)).reshape(N * H, L_in)
    if L != L_in:
        x2d = jnp.pad(x2d, ((0, 0), (0, L - L_in)))

    wband = _build_row_band(w_oihw, W, ph, pw)               # (KH, W*Cin, W*Cout)
    wband = jnp.pad(wband, ((0, 0), (0, L - L_in), (0, L - L_out)))
    wfused = wband.reshape(KH * L, L)                        # single K = KH*L matmul

    w_bytes = 2 * KH * L * L * 4                             # double-buffered band
    per_image = 9 * H * L * 4                                # in/out bufs + taps + acc
    bn = _choose_block_units(N, per_image, H, budget - w_bytes)
    MB = bn * H
    grid = (N // bn,)

    kernel = functools.partial(_resblock_rows_kernel, H=H, KH=KH, ph=ph)
    out2d = pl.pallas_call(
        kernel,
        out_shape=jax.ShapeDtypeStruct((N * H, L), x_nchw.dtype),
        grid_spec=pltpu.PrefetchScalarGridSpec(
            num_scalar_prefetch=0,
            grid=grid,
            in_specs=[
                pl.BlockSpec((MB, L), lambda i: (i, 0)),
                pl.BlockSpec((KH * L, L), lambda i: (0, 0)),  # resident weights
            ],
            out_specs=pl.BlockSpec((MB, L), lambda i: (i, 0)),
        ),
        compiler_params=pltpu.CompilerParams(
            dimension_semantics=("parallel",),
            vmem_limit_bytes=budget,
        ),
    )(x2d, wfused)

    if L != L_out:
        out2d = out2d[:, :L_out]
    return jnp.transpose(out2d.reshape(N, H, W, Cout), (0, 3, 1, 2))


# ---------------------------------------------------------------------------
# Public forward + reference.
# ---------------------------------------------------------------------------

def resblock_forward(x_nchw, w_oihw):
    """Default ResBlock forward: ReLU(conv3x3 same, no bias)(x) + x."""
    N, Cin, H, W = x_nchw.shape
    Cout, Cin2, KH, KW = w_oihw.shape
    assert Cin2 == Cin
    assert Cin == Cout, "default ResBlock identity residual requires Cin == Cout"
    ph, pw = (KH - 1) // 2, (KW - 1) // 2

    budget = _vmem_budget_bytes()
    Fp = _round_up(Cin * H * W, 128)
    full_band_bytes = 2 * Fp * Fp * 4            # incl. pipeline double-buffering
    # Tiny feature maps (like the default 4x16x16): one big lane-dense matmul.
    # NOTE: at larger configs pipeline_mode=pl.Buffered(1) on the band spec
    # could halve its VMEM footprint (constant index_map never needs 2 buffers).
    if full_band_bytes <= budget // 2:
        return _forward_full_band(x_nchw, w_oihw, ph, pw, budget)
    return _forward_row_band(x_nchw, w_oihw, ph, pw, budget)


def resblock_reference(x_nchw, w_oihw):
    """Pure-JAX reference matching the PyTorch forward (default config)."""
    fx = lax.conv_general_dilated(
        x_nchw, w_oihw, window_strides=(1, 1), padding=((1, 1), (1, 1)),
        dimension_numbers=("NCHW", "OIHW", "NCHW"))
    return jnp.maximum(fx, 0.0) + x_nchw


if __name__ == "__main__":
    N, C, H, W = 2, 4, 16, 16          # input_channels == output_channels == 4
    key = jax.random.PRNGKey(0)
    kx, kw = jax.random.split(key)
    x = jax.random.normal(kx, (N, C, H, W), dtype=jnp.float32)
    # Deterministic Conv2d weight init (Kaiming-uniform-like scaling).
    fan_in = C * 3 * 3
    bound = 1.0 / float(fan_in) ** 0.5
    w = jax.random.uniform(kw, (C, C, 3, 3), dtype=jnp.float32,
                           minval=-bound, maxval=bound)

    out = jax.block_until_ready(jax.jit(resblock_forward)(x, w))
    ref = resblock_reference(x, w)
    assert out.shape == (N, C, H, W)
    assert jnp.allclose(out, ref, atol=1e-4, rtol=1e-4)
    print("KERNEL_OK")
</pallas_src>

<mosaic_0001>
module attributes {stable_mosaic.version = 11 : i64} {
  func.func @_resblock_full_kernel(%arg0: i32, %arg1: memref<2x1024xf32, #tpu.memory_space<vmem>>, %arg2: memref<1024x1024xf32, #tpu.memory_space<vmem>>, %arg3: memref<2x1024xf32, #tpu.memory_space<vmem>>) attributes {dimension_semantics = [#tpu.dimension_semantics<parallel>], iteration_bounds = array<i64: 1>, scalar_prefetch = 0 : i64, scratch_operands = 0 : i64, tpu.core_type = #tpu.core_type<tc>, window_params = [{transform_indices = @transform_0, window_bounds = array<i64: 2, 1024>}, {pipeline_mode = #tpu.pipeline_mode<synchronous>, transform_indices = @transform_1, window_bounds = array<i64: 1024, 1024>}, {transform_indices = @transform_2, window_bounds = array<i64: 2, 1024>}]} {
    %c0 = arith.constant 0 : index
    %c0_0 = arith.constant 0 : index
    %0 = vector.load %arg1[%c0, %c0_0] : memref<2x1024xf32, #tpu.memory_space<vmem>>, vector<2x1024xf32>
    %c0_1 = arith.constant 0 : index
    %c0_2 = arith.constant 0 : index
    %1 = vector.load %arg2[%c0_1, %c0_2] : memref<1024x1024xf32, #tpu.memory_space<vmem>>, vector<1024x1024xf32>
    %cst = arith.constant dense<0.000000e+00> : vector<2x1024xf32>
    %2 = tpu.matmul %0, %1, %cst {dimension_numbers = #tpu.dot_dimension_numbers<[1], [0], [0], [1], [0, 0, 1, 1], [], []>} : vector<2x1024xf32>, vector<1024x1024xf32>, vector<2x1024xf32> -> vector<2x1024xf32>
    %cst_3 = arith.constant 0.000000e+00 : f32
    %3 = vector.broadcast %cst_3 : f32 to vector<2x1024xf32>
    %4 = arith.maximumf %2, %3 : vector<2x1024xf32>
    %5 = arith.addf %4, %0 : vector<2x1024xf32>
    %c0_4 = arith.constant 0 : index
    %c0_5 = arith.constant 0 : index
    %6 = vector.load %arg3[%c0_4, %c0_5] : memref<2x1024xf32, #tpu.memory_space<vmem>>, vector<2x1024xf32>
    tpu.vector_store %arg3[%c0_4, %c0_5], %5 {strides = array<i32>} : memref<2x1024xf32, #tpu.memory_space<vmem>>, vector<2x1024xf32>,
    return
  }
  func.func @transform_0(%arg0: i32) -> (i32, i32) {
    %c0_i32 = arith.constant 0 : i32
    %c0_i32_0 = arith.constant 0 : i32
    return %arg0, %c0_i32 : i32, i32
  }
  func.func @transform_1(%arg0: i32) -> (i32, i32) {
    %c0_i32 = arith.constant 0 : i32
    %c0_i32_0 = arith.constant 0 : i32
    %c0_i32_1 = arith.constant 0 : i32
    return %c0_i32, %c0_i32_0 : i32, i32
  }
  func.func @transform_2(%arg0: i32) -> (i32, i32) {
    %c0_i32 = arith.constant 0 : i32
    %c0_i32_0 = arith.constant 0 : i32
    return %arg0, %c0_i32 : i32, i32
  }
}

</mosaic_0001>

<llo_original>
// kernel: resblock_forward.1
$region0: #{resblock_forward.1}
  #allocation0 [shape = 'u32[]', space=smem, size = 0x4, offset = 0x4, fixed_abs, tag = 'smem constant byte address 0x4 - core index']
  #allocation1 [shape = 'u32[144,128]{1,0:T(1,128)}', space=vmem, size = 0x12000, scoped, tag = 'internal scratch']
  %s0 = inlined_call_operand.vmem [shape: f32[2,1024], index: 0, kind: input, shape index: {}]
  %s1 = inlined_call_operand.vmem [shape: f32[1024,1024], index: 1, kind: input, shape index: {}]
  %s2 = inlined_call_operand.vmem [shape: f32[2,1024], index: 2, kind: output, shape index: {}]
  %s3 = sld [smem:[#allocation0]]
  $region18: #{resblock_forward.1} parent=0
    _
  %s5 = ssub.s32 1, %s3
  %s6 = scalar_select 0, %s5, %s3
  // Predicated region
  $region2: #{resblock_forward.1} parent=0 // pred_check
    _
  $region3: #{resblock_forward.1} parent=0 // pred_check_branch
    %8 = sbr.rel (0) target = $region5
  $region4: #{resblock_forward.1} parent=0 // pred_region
    _
  $region5: #{resblock_forward.1} parent=0 // pred_fallthru
    _
  // Predicated region
  $region6: #{resblock_forward.1} parent=0 // pred_check
    _
  $region7: #{resblock_forward.1} parent=0 // pred_check_branch
    %10 = sbr.rel (0) target = $region9
  $region8: #{resblock_forward.1} parent=0 // pred_region
    _
  $region9: #{resblock_forward.1} parent=0 // pred_fallthru
    _
  %v11 = vld [vmem:[%s0] sm:$0xff]
  %v12 = vld [vmem:[%s0 + $0x8] sm:$0xff]
  %v13 = vld [vmem:[%s1] sm:$0xff]
  %v14 = vld [vmem:[%s1 + $0x8] sm:$0xff]
  %v15 = vld [vmem:[%s1 + $0x10] sm:$0xff]
  %v16 = vld [vmem:[%s1 + $0x18] sm:$0xff]
  %v17 = vld [vmem:[%s1 + $0x20] sm:$0xff]
  %v18 = vld [vmem:[%s1 + $0x28] sm:$0xff]
  %v19 = vld [vmem:[%s1 + $0x30] sm:$0xff]
  %v20 = vld [vmem:[%s1 + $0x38] sm:$0xff]
  %v21 = vld [vmem:[%s1 + $0x40] sm:$0xff]
  %v22 = vld [vmem:[%s1 + $0x48] sm:$0xff]
  %v23 = vld [vmem:[%s1 + $0x50] sm:$0xff]
  %v24 = vld [vmem:[%s1 + $0x58] sm:$0xff]
  %v25 = vld [vmem:[%s1 + $0x60] sm:$0xff]
  %v26 = vld [vmem:[%s1 + $0x68] sm:$0xff]
  %v27 = vld [vmem:[%s1 + $0x70] sm:$0xff]
  %v28 = vld [vmem:[%s1 + $0x78] sm:$0xff]
  %v29 = vld [vmem:[%s1 + $0x80] sm:$0xff]
  %v30 = vld [vmem:[%s1 + $0x88] sm:$0xff]
  %v31 = vld [vmem:[%s1 + $0x90] sm:$0xff]
  %v32 = vld [vmem:[%s1 + $0x98] sm:$0xff]
  %v33 = vld [vmem:[%s1 + $0xa0] sm:$0xff]
  %v34 = vld [vmem:[%s1 + $0xa8] sm:$0xff]
  %v35 = vld [vmem:[%s1 + $0xb0] sm:$0xff]
  %v36 = vld [vmem:[%s1 + $0xb8] sm:$0xff]
  %v37 = vld [vmem:[%s1 + $0xc0] sm:$0xff]
  %v38 = vld [vmem:[%s1 + $0xc8] sm:$0xff]
  %v39 = vld [vmem:[%s1 + $0xd0] sm:$0xff]
  %v40 = vld [vmem:[%s1 + $0xd8] sm:$0xff]
  %v41 = vld [vmem:[%s1 + $0xe0] sm:$0xff]
  %v42 = vld [vmem:[%s1 + $0xe8] sm:$0xff]
  %v43 = vld [vmem:[%s1 + $0xf0] sm:$0xff]
  %v44 = vld [vmem:[%s1 + $0xf8] sm:$0xff]
  %v45 = vld [vmem:[%s1 + $0x100] sm:$0xff]
  %v46 = vld [vmem:[%s1 + $0x108] sm:$0xff]
  %v47 = vld [vmem:[%s1 + $0x110] sm:$0xff]
  %v48 = vld [vmem:[%s1 + $0x118] sm:$0xff]
  %v49 = vld [vmem:[%s1 + $0x120] sm:$0xff]
  %v50 = vld [vmem:[%s1 + $0x128] sm:$0xff]
  %v51 = vld [vmem:[%s1 + $0x130] sm:$0xff]
  %v52 = vld [vmem:[%s1 + $0x138] sm:$0xff]
  %v53 = vld [vmem:[%s1 + $0x140] sm:$0xff]
  %v54 = vld [vmem:[%s1 + $0x148] sm:$0xff]
  %v55 = vld [vmem:[%s1 + $0x150] sm:$0xff]
  %v56 = vld [vmem:[%s1 + $0x158] sm:$0xff]
  %v57 = vld [vmem:[%s1 + $0x160] sm:$0xff]
  %v58 = vld [vmem:[%s1 + $0x168] sm:$0xff]
  %v59 = vld [vmem:[%s1 + $0x170] sm:$0xff]
  %v60 = vld [vmem:[%s1 + $0x178] sm:$0xff]
  %v61 = vld [vmem:[%s1 + $0x180] sm:$0xff]
  %v62 = vld [vmem:[%s1 + $0x188] sm:$0xff]
  %v63 = vld [vmem:[%s1 + $0x190] sm:$0xff]
  %v64 = vld [vmem:[%s1 + $0x198] sm:$0xff]
  %v65 = vld [vmem:[%s1 + $0x1a0] sm:$0xff]
  %v66 = vld [vmem:[%s1 + $0x1a8] sm:$0xff]
  %v67 = vld [vmem:[%s1 + $0x1b0] sm:$0xff]
  %v68 = vld [vmem:[%s1 + $0x1b8] sm:$0xff]
  %v69 = vld [vmem:[%s1 + $0x1c0] sm:$0xff]
  %v70 = vld [vmem:[%s1 + $0x1c8] sm:$0xff]
  %v71 = vld [vmem:[%s1 + $0x1d0] sm:$0xff]
  %v72 = vld [vmem:[%s1 + $0x1d8] sm:$0xff]
  %v73 = vld [vmem:[%s1 + $0x1e0] sm:$0xff]
  %v74 = vld [vmem:[%s1 + $0x1e8] sm:$0xff]
  %v75 = vld [vmem:[%s1 + $0x1f0] sm:$0xff]
  %v76 = vld [vmem:[%s1 + $0x1f8] sm:$0xff]
  %v77 = vld [vmem:[%s1 + $0x200] sm:$0xff]
  %v78 = vld [vmem:[%s1 + $0x208] sm:$0xff]
  %v79 = vld [vmem:[%s1 + $0x210] sm:$0xff]
  %v80 = vld [vmem:[%s1 + $0x218] sm:$0xff]
  %v81 = vld [vmem:[%s1 + $0x220] sm:$0xff]
  %v82 = vld [vmem:[%s1 + $0x228] sm:$0xff]
  %v83 = vld [vmem:[%s1 + $0x230] sm:$0xff]
  %v84 = vld [vmem:[%s1 + $0x238] sm:$0xff]
  %v85 = vld [vmem:[%s1 + $0x240] sm:$0xff]
  %v86 = vld [vmem:[%s1 + $0x248] sm:$0xff]
  %v87 = vld [vmem:[%s1 + $0x250] sm:$0xff]
  %v88 = vld [vmem:[%s1 + $0x258] sm:$0xff]
  %v89 = vld [vmem:[%s1 + $0x260] sm:$0xff]
  %v90 = vld [vmem:[%s1 + $0x268] sm:$0xff]
  %v91 = vld [vmem:[%s1 + $0x270] sm:$0xff]
  %v92 = vld [vmem:[%s1 + $0x278] sm:$0xff]
  %v93 = vld [vmem:[%s1 + $0x280] sm:$0xff]
  %v94 = vld [vmem:[%s1 + $0x288] sm:$0xff]
  %v95 = vld [vmem:[%s1 + $0x290] sm:$0xff]
  %v96 = vld [vmem:[%s1 + $0x298] sm:$0xff]
  %v97 = vld [vmem:[%s1 + $0x2a0] sm:$0xff]
  %v98 = vld [vmem:[%s1 + $0x2a8] sm:$0xff]
  %v99 = vld [vmem:[%s1 + $0x2b0] sm:$0xff]
  %v100 = vld [vmem:[%s1 + $0x2b8] sm:$0xff]
  %v101 = vld [vmem:[%s1 + $0x2c0] sm:$0xff]
  %v102 = vld [vmem:[%s1 + $0x2c8] sm:$0xff]
  %v103 = vld [vmem:[%s1 + $0x2d0] sm:$0xff]
  %v104 = vld [vmem:[%s1 + $0x2d8] sm:$0xff]
  %v105 = vld [vmem:[%s1 + $0x2e0] sm:$0xff]
  %v106 = vld [vmem:[%s1 + $0x2e8] sm:$0xff]
  %v107 = vld [vmem:[%s1 + $0x2f0] sm:$0xff]
  %v108 = vld [vmem:[%s1 + $0x2f8] sm:$0xff]
  %v109 = vld [vmem:[%s1 + $0x300] sm:$0xff]
  %v110 = vld [vmem:[%s1 + $0x308] sm:$0xff]
  %v111 = vld [vmem:[%s1 + $0x310] sm:$0xff]
  %v112 = vld [vmem:[%s1 + $0x318] sm:$0xff]
  %v113 = vld [vmem:[%s1 + $0x320] sm:$0xff]
  %v114 = vld [vmem:[%s1 + $0x328] sm:$0xff]
  %v115 = vld [vmem:[%s1 + $0x330] sm:$0xff]
  %v116 = vld [vmem:[%s1 + $0x338] sm:$0xff]
  %v117 = vld [vmem:[%s1 + $0x340] sm:$0xff]
  %v118 = vld [vmem:[%s1 + $0x348] sm:$0xff]
  %v119 = vld [vmem:[%s1 + $0x350] sm:$0xff]
  %v120 = vld [vmem:[%s1 + $0x358] sm:$0xff]
  %v121 = vld [vmem:[%s1 + $0x360] sm:$0xff]
  %v122 = vld [vmem:[%s1 + $0x368] sm:$0xff]
  %v123 = vld [vmem:[%s1 + $0x370] sm:$0xff]
  %v124 = vld [vmem:[%s1 + $0x378] sm:$0xff]
  %v125 = vld [vmem:[%s1 + $0x380] sm:$0xff]
  %v126 = vld [vmem:[%s1 + $0x388] sm:$0xff]
  %v127 = vld [vmem:[%s1 + $0x390] sm:$0xff]
  %v128 = vld [vmem:[%s1 + $0x398] sm:$0xff]
  %v129 = vld [vmem:[%s1 + $0x3a0] sm:$0xff]
  %v130 = vld [vmem:[%s1 + $0x3a8] sm:$0xff]
  %v131 = vld [vmem:[%s1 + $0x3b0] sm:$0xff]
  %v132 = vld [vmem:[%s1 + $0x3b8] sm:$0xff]
  %v133 = vld [vmem:[%s1 + $0x3c0] sm:$0xff]
  %v134 = vld [vmem:[%s1 + $0x3c8] sm:$0xff]
  %v135 = vld [vmem:[%s1 + $0x3d0] sm:$0xff]
  %v136 = vld [vmem:[%s1 + $0x3d8] sm:$0xff]
  %v137 = vld [vmem:[%s1 + $0x3e0] sm:$0xff]
  %v138 = vld [vmem:[%s1 + $0x3e8] sm:$0xff]
  %v139 = vld [vmem:[%s1 + $0x3f0] sm:$0xff]
  %v140 = vld [vmem:[%s1 + $0x3f8] sm:$0xff]
  %v141 = vld [vmem:[%s1 + $0x400] sm:$0xff]
  %v142 = vld [vmem:[%s1 + $0x408] sm:$0xff]
  %v143 = vld [vmem:[%s1 + $0x410] sm:$0xff]
  %v144 = vld [vmem:[%s1 + $0x418] sm:$0xff]
  %v145 = vld [vmem:[%s1 + $0x420] sm:$0xff]
  %v146 = vld [vmem:[%s1 + $0x428] sm:$0xff]
  %v147 = vld [vmem:[%s1 + $0x430] sm:$0xff]
  %v148 = vld [vmem:[%s1 + $0x438] sm:$0xff]
  %v149 = vld [vmem:[%s1 + $0x440] sm:$0xff]
  %v150 = vld [vmem:[%s1 + $0x448] sm:$0xff]
  %v151 = vld [vmem:[%s1 + $0x450] sm:$0xff]
  %v152 = vld [vmem:[%s1 + $0x458] sm:$0xff]
  %v153 = vld [vmem:[%s1 + $0x460] sm:$0xff]
  %v154 = vld [vmem:[%s1 + $0x468] sm:$0xff]
  %v155 = vld [vmem:[%s1 + $0x470] sm:$0xff]
  %v156 = vld [vmem:[%s1 + $0x478] sm:$0xff]
  %v157 = vld [vmem:[%s1 + $0x480] sm:$0xff]
  %v158 = vld [vmem:[%s1 + $0x488] sm:$0xff]
  %v159 = vld [vmem:[%s1 + $0x490] sm:$0xff]
  %v160 = vld [vmem:[%s1 + $0x498] sm:$0xff]
  %v161 = vld [vmem:[%s1 + $0x4a0] sm:$0xff]
  %v162 = vld [vmem:[%s1 + $0x4a8] sm:$0xff]
  %v163 = vld [vmem:[%s1 + $0x4b0] sm:$0xff]
  %v164 = vld [vmem:[%s1 + $0x4b8] sm:$0xff]
  %v165 = vld [vmem:[%s1 + $0x4c0] sm:$0xff]
  %v166 = vld [vmem:[%s1 + $0x4c8] sm:$0xff]
  %v167 = vld [vmem:[%s1 + $0x4d0] sm:$0xff]
  %v168 = vld [vmem:[%s1 + $0x4d8] sm:$0xff]
  %v169 = vld [vmem:[%s1 + $0x4e0] sm:$0xff]
  %v170 = vld [vmem:[%s1 + $0x4e8] sm:$0xff]
  %v171 = vld [vmem:[%s1 + $0x4f0] sm:$0xff]
  %v172 = vld [vmem:[%s1 + $0x4f8] sm:$0xff]
  %v173 = vld [vmem:[%s1 + $0x500] sm:$0xff]
  %v174 = vld [vmem:[%s1 + $0x508] sm:$0xff]
  %v175 = vld [vmem:[%s1 + $0x510] sm:$0xff]
  %v176 = vld [vmem:[%s1 + $0x518] sm:$0xff]
  %v177 = vld [vmem:[%s1 + $0x520] sm:$0xff]
  %v178 = vld [vmem:[%s1 + $0x528] sm:$0xff]
  %v179 = vld [vmem:[%s1 + $0x530] sm:$0xff]
  %v180 = vld [vmem:[%s1 + $0x538] sm:$0xff]
  %v181 = vld [vmem:[%s1 + $0x540] sm:$0xff]
  %v182 = vld [vmem:[%s1 + $0x548] sm:$0xff]
  %v183 = vld [vmem:[%s1 + $0x550] sm:$0xff]
  %v184 = vld [vmem:[%s1 + $0x558] sm:$0xff]
  %v185 = vld [vmem:[%s1 + $0x560] sm:$0xff]
  %v186 = vld [vmem:[%s1 + $0x568] sm:$0xff]
  %v187 = vld [vmem:[%s1 + $0x570] sm:$0xff]
  %v188 = vld [vmem:[%s1 + $0x578] sm:$0xff]
  %v189 = vld [vmem:[%s1 + $0x580] sm:$0xff]
  %v190 = vld [vmem:[%s1 + $0x588] sm:$0xff]
  %v191 = vld [vmem:[%s1 + $0x590] sm:$0xff]
  %v192 = vld [vmem:[%s1 + $0x598] sm:$0xff]
  %v193 = vld [vmem:[%s1 + $0x5a0] sm:$0xff]
  %v194 = vld [vmem:[%s1 + $0x5a8] sm:$0xff]
  %v195 = vld [vmem:[%s1 + $0x5b0] sm:$0xff]
  %v196 = vld [vmem:[%s1 + $0x5b8] sm:$0xff]
  %v197 = vld [vmem:[%s1 + $0x5c0] sm:$0xff]
  %v198 = vld [vmem:[%s1 + $0x5c8] sm:$0xff]
  %v199 = vld [vmem:[%s1 + $0x5d0] sm:$0xff]
  %v200 = vld [vmem:[%s1 + $0x5d8] sm:$0xff]
  %v201 = vld [vmem:[%s1 + $0x5e0] sm:$0xff]
  %v202 = vld [vmem:[%s1 + $0x5e8] sm:$0xff]
  %v203 = vld [vmem:[%s1 + $0x5f0] sm:$0xff]
  %v204 = vld [vmem:[%s1 + $0x5f8] sm:$0xff]
  %v205 = vld [vmem:[%s1 + $0x600] sm:$0xff]
  %v206 = vld [vmem:[%s1 + $0x608] sm:$0xff]
  %v207 = vld [vmem:[%s1 + $0x610] sm:$0xff]
  %v208 = vld [vmem:[%s1 + $0x618] sm:$0xff]
  %v209 = vld [vmem:[%s1 + $0x620] sm:$0xff]
  %v210 = vld [vmem:[%s1 + $0x628] sm:$0xff]
  %v211 = vld [vmem:[%s1 + $0x630] sm:$0xff]
  %v212 = vld [vmem:[%s1 + $0x638] sm:$0xff]
  %v213 = vld [vmem:[%s1 + $0x640] sm:$0xff]
  %v214 = vld [vmem:[%s1 + $0x648] sm:$0xff]
  %v215 = vld [vmem:[%s1 + $0x650] sm:$0xff]
  %v216 = vld [vmem:[%s1 + $0x658] sm:$0xff]
  %v217 = vld [vmem:[%s1 + $0x660] sm:$0xff]
  %v218 = vld [vmem:[%s1 + $0x668] sm:$0xff]
  %v219 = vld [vmem:[%s1 + $0x670] sm:$0xff]
  %v220 = vld [vmem:[%s1 + $0x678] sm:$0xff]
  %v221 = vld [vmem:[%s1 + $0x680] sm:$0xff]
  %v222 = vld [vmem:[%s1 + $0x688] sm:$0xff]
  %v223 = vld [vmem:[%s1 + $0x690] sm:$0xff]
  %v224 = vld [vmem:[%s1 + $0x698] sm:$0xff]
  %v225 = vld [vmem:[%s1 + $0x6a0] sm:$0xff]
  %v226 = vld [vmem:[%s1 + $0x6a8] sm:$0xff]
  %v227 = vld [vmem:[%s1 + $0x6b0] sm:$0xff]
  %v228 = vld [vmem:[%s1 + $0x6b8] sm:$0xff]
  %v229 = vld [vmem:[%s1 + $0x6c0] sm:$0xff]
  %v230 = vld [vmem:[%s1 + $0x6c8] sm:$0xff]
  %v231 = vld [vmem:[%s1 + $0x6d0] sm:$0xff]
  %v232 = vld [vmem:[%s1 + $0x6d8] sm:$0xff]
  %v233 = vld [vmem:[%s1 + $0x6e0] sm:$0xff]
  %v234 = vld [vmem:[%s1 + $0x6e8] sm:$0xff]
  %v235 = vld [vmem:[%s1 + $0x6f0] sm:$0xff]
  %v236 = vld [vmem:[%s1 + $0x6f8] sm:$0xff]
  %v237 = vld [vmem:[%s1 + $0x700] sm:$0xff]
  %v238 = vld [vmem:[%s1 + $0x708] sm:$0xff]
  %v239 = vld [vmem:[%s1 + $0x710] sm:$0xff]
  %v240 = vld [vmem:[%s1 + $0x718] sm:$0xff]
  %v241 = vld [vmem:[%s1 + $0x720] sm:$0xff]
  %v242 = vld [vmem:[%s1 + $0x728] sm:$0xff]
  %v243 = vld [vmem:[%s1 + $0x730] sm:$0xff]
  %v244 = vld [vmem:[%s1 + $0x738] sm:$0xff]
  %v245 = vld [vmem:[%s1 + $0x740] sm:$0xff]
  %v246 = vld [vmem:[%s1 + $0x748] sm:$0xff]
  %v247 = vld [vmem:[%s1 + $0x750] sm:$0xff]
  %v248 = vld [vmem:[%s1 + $0x758] sm:$0xff]
  %v249 = vld [vmem:[%s1 + $0x760] sm:$0xff]
  %v250 = vld [vmem:[%s1 + $0x768] sm:$0xff]
  %v251 = vld [vmem:[%s1 + $0x770] sm:$0xff]
  %v252 = vld [vmem:[%s1 + $0x778] sm:$0xff]
  %v253 = vld [vmem:[%s1 + $0x780] sm:$0xff]
  %v254 = vld [vmem:[%s1 + $0x788] sm:$0xff]
  %v255 = vld [vmem:[%s1 + $0x790] sm:$0xff]
  %v256 = vld [vmem:[%s1 + $0x798] sm:$0xff]
  %v257 = vld [vmem:[%s1 + $0x7a0] sm:$0xff]
  %v258 = vld [vmem:[%s1 + $0x7a8] sm:$0xff]
  %v259 = vld [vmem:[%s1 + $0x7b0] sm:$0xff]
  %v260 = vld [vmem:[%s1 + $0x7b8] sm:$0xff]
  %v261 = vld [vmem:[%s1 + $0x7c0] sm:$0xff]
  %v262 = vld [vmem:[%s1 + $0x7c8] sm:$0xff]
  %v263 = vld [vmem:[%s1 + $0x7d0] sm:$0xff]
  %v264 = vld [vmem:[%s1 + $0x7d8] sm:$0xff]
  %v265 = vld [vmem:[%s1 + $0x7e0] sm:$0xff]
  %v266 = vld [vmem:[%s1 + $0x7e8] sm:$0xff]
  %v267 = vld [vmem:[%s1 + $0x7f0] sm:$0xff]
  %v268 = vld [vmem:[%s1 + $0x7f8] sm:$0xff]
  %v269 = vld [vmem:[%s1 + $0x800] sm:$0xff]
  %v270 = vld [vmem:[%s1 + $0x808] sm:$0xff]
  %v271 = vld [vmem:[%s1 + $0x810] sm:$0xff]
  %v272 = vld [vmem:[%s1 + $0x818] sm:$0xff]
  %v273 = vld [vmem:[%s1 + $0x820] sm:$0xff]
  %v274 = vld [vmem:[%s1 + $0x828] sm:$0xff]
  %v275 = vld [vmem:[%s1 + $0x830] sm:$0xff]
  %v276 = vld [vmem:[%s1 + $0x838] sm:$0xff]
  %v277 = vld [vmem:[%s1 + $0x840] sm:$0xff]
  %v278 = vld [vmem:[%s1 + $0x848] sm:$0xff]
  %v279 = vld [vmem:[%s1 + $0x850] sm:$0xff]
  %v280 = vld [vmem:[%s1 + $0x858] sm:$0xff]
  %v281 = vld [vmem:[%s1 + $0x860] sm:$0xff]
  %v282 = vld [vmem:[%s1 + $0x868] sm:$0xff]
  %v283 = vld [vmem:[%s1 + $0x870] sm:$0xff]
  %v284 = vld [vmem:[%s1 + $0x878] sm:$0xff]
  %v285 = vld [vmem:[%s1 + $0x880] sm:$0xff]
  %v286 = vld [vmem:[%s1 + $0x888] sm:$0xff]
  %v287 = vld [vmem:[%s1 + $0x890] sm:$0xff]
  %v288 = vld [vmem:[%s1 + $0x898] sm:$0xff]
  %v289 = vld [vmem:[%s1 + $0x8a0] sm:$0xff]
  %v290 = vld [vmem:[%s1 + $0x8a8] sm:$0xff]
  %v291 = vld [vmem:[%s1 + $0x8b0] sm:$0xff]
  %v292 = vld [vmem:[%s1 + $0x8b8] sm:$0xff]
  %v293 = vld [vmem:[%s1 + $0x8c0] sm:$0xff]
  %v294 = vld [vmem:[%s1 + $0x8c8] sm:$0xff]
  %v295 = vld [vmem:[%s1 + $0x8d0] sm:$0xff]
  %v296 = vld [vmem:[%s1 + $0x8d8] sm:$0xff]
  %v297 = vld [vmem:[%s1 + $0x8e0] sm:$0xff]
  %v298 = vld [vmem:[%s1 + $0x8e8] sm:$0xff]
  %v299 = vld [vmem:[%s1 + $0x8f0] sm:$0xff]
  %v300 = vld [vmem:[%s1 + $0x8f8] sm:$0xff]
  %v301 = vld [vmem:[%s1 + $0x900] sm:$0xff]
  %v302 = vld [vmem:[%s1 + $0x908] sm:$0xff]
  %v303 = vld [vmem:[%s1 + $0x910] sm:$0xff]
  %v304 = vld [vmem:[%s1 + $0x918] sm:$0xff]
  %v305 = vld [vmem:[%s1 + $0x920] sm:$0xff]
  %v306 = vld [vmem:[%s1 + $0x928] sm:$0xff]
  %v307 = vld [vmem:[%s1 + $0x930] sm:$0xff]
  %v308 = vld [vmem:[%s1 + $0x938] sm:$0xff]
  %v309 = vld [vmem:[%s1 + $0x940] sm:$0xff]
  %v310 = vld [vmem:[%s1 + $0x948] sm:$0xff]
  %v311 = vld [vmem:[%s1 + $0x950] sm:$0xff]
  %v312 = vld [vmem:[%s1 + $0x958] sm:$0xff]
  %v313 = vld [vmem:[%s1 + $0x960] sm:$0xff]
  %v314 = vld [vmem:[%s1 + $0x968] sm:$0xff]
  %v315 = vld [vmem:[%s1 + $0x970] sm:$0xff]
  %v316 = vld [vmem:[%s1 + $0x978] sm:$0xff]
  %v317 = vld [vmem:[%s1 + $0x980] sm:$0xff]
  %v318 = vld [vmem:[%s1 + $0x988] sm:$0xff]
  %v319 = vld [vmem:[%s1 + $0x990] sm:$0xff]
  %v320 = vld [vmem:[%s1 + $0x998] sm:$0xff]
  %v321 = vld [vmem:[%s1 + $0x9a0] sm:$0xff]
  %v322 = vld [vmem:[%s1 + $0x9a8] sm:$0xff]
  %v323 = vld [vmem:[%s1 + $0x9b0] sm:$0xff]
  %v324 = vld [vmem:[%s1 + $0x9b8] sm:$0xff]
  %v325 = vld [vmem:[%s1 + $0x9c0] sm:$0xff]
  %v326 = vld [vmem:[%s1 + $0x9c8] sm:$0xff]
  %v327 = vld [vmem:[%s1 + $0x9d0] sm:$0xff]
  %v328 = vld [vmem:[%s1 + $0x9d8] sm:$0xff]
  %v329 = vld [vmem:[%s1 + $0x9e0] sm:$0xff]
  %v330 = vld [vmem:[%s1 + $0x9e8] sm:$0xff]
  %v331 = vld [vmem:[%s1 + $0x9f0] sm:$0xff]
  %v332 = vld [vmem:[%s1 + $0x9f8] sm:$0xff]
  %v333 = vld [vmem:[%s1 + $0xa00] sm:$0xff]
  %v334 = vld [vmem:[%s1 + $0xa08] sm:$0xff]
  %v335 = vld [vmem:[%s1 + $0xa10] sm:$0xff]
  %v336 = vld [vmem:[%s1 + $0xa18] sm:$0xff]
  %v337 = vld [vmem:[%s1 + $0xa20] sm:$0xff]
  %v338 = vld [vmem:[%s1 + $0xa28] sm:$0xff]
  %v339 = vld [vmem:[%s1 + $0xa30] sm:$0xff]
  %v340 = vld [vmem:[%s1 + $0xa38] sm:$0xff]
  %v341 = vld [vmem:[%s1 + $0xa40] sm:$0xff]
  %v342 = vld [vmem:[%s1 + $0xa48] sm:$0xff]
  %v343 = vld [vmem:[%s1 + $0xa50] sm:$0xff]
  %v344 = vld [vmem:[%s1 + $0xa58] sm:$0xff]
  %v345 = vld [vmem:[%s1 + $0xa60] sm:$0xff]
  %v346 = vld [vmem:[%s1 + $0xa68] sm:$0xff]
  %v347 = vld [vmem:[%s1 + $0xa70] sm:$0xff]
  %v348 = vld [vmem:[%s1 + $0xa78] sm:$0xff]
  %v349 = vld [vmem:[%s1 + $0xa80] sm:$0xff]
  %v350 = vld [vmem:[%s1 + $0xa88] sm:$0xff]
  %v351 = vld [vmem:[%s1 + $0xa90] sm:$0xff]
  %v352 = vld [vmem:[%s1 + $0xa98] sm:$0xff]
  %v353 = vld [vmem:[%s1 + $0xaa0] sm:$0xff]
  %v354 = vld [vmem:[%s1 + $0xaa8] sm:$0xff]
  %v355 = vld [vmem:[%s1 + $0xab0] sm:$0xff]
  %v356 = vld [vmem:[%s1 + $0xab8] sm:$0xff]
  %v357 = vld [vmem:[%s1 + $0xac0] sm:$0xff]
  %v358 = vld [vmem:[%s1 + $0xac8] sm:$0xff]
  %v359 = vld [vmem:[%s1 + $0xad0] sm:$0xff]
  %v360 = vld [vmem:[%s1 + $0xad8] sm:$0xff]
  %v361 = vld [vmem:[%s1 + $0xae0] sm:$0xff]
  %v362 = vld [vmem:[%s1 + $0xae8] sm:$0xff]
  %v363 = vld [vmem:[%s1 + $0xaf0] sm:$0xff]
  %v364 = vld [vmem:[%s1 + $0xaf8] sm:$0xff]
  %v365 = vld [vmem:[%s1 + $0xb00] sm:$0xff]
  %v366 = vld [vmem:[%s1 + $0xb08] sm:$0xff]
  %v367 = vld [vmem:[%s1 + $0xb10] sm:$0xff]
  %v368 = vld [vmem:[%s1 + $0xb18] sm:$0xff]
  %v369 = vld [vmem:[%s1 + $0xb20] sm:$0xff]
  %v370 = vld [vmem:[%s1 + $0xb28] sm:$0xff]
  %v371 = vld [vmem:[%s1 + $0xb30] sm:$0xff]
  %v372 = vld [vmem:[%s1 + $0xb38] sm:$0xff]
  %v373 = vld [vmem:[%s1 + $0xb40] sm:$0xff]
  %v374 = vld [vmem:[%s1 + $0xb48] sm:$0xff]
  %v375 = vld [vmem:[%s1 + $0xb50] sm:$0xff]
  %v376 = vld [vmem:[%s1 + $0xb58] sm:$0xff]
  %v377 = vld [vmem:[%s1 + $0xb60] sm:$0xff]
  %v378 = vld [vmem:[%s1 + $0xb68] sm:$0xff]
  %v379 = vld [vmem:[%s1 + $0xb70] sm:$0xff]
  %v380 = vld [vmem:[%s1 + $0xb78] sm:$0xff]
  %v381 = vld [vmem:[%s1 + $0xb80] sm:$0xff]
  %v382 = vld [vmem:[%s1 + $0xb88] sm:$0xff]
  %v383 = vld [vmem:[%s1 + $0xb90] sm:$0xff]
  %v384 = vld [vmem:[%s1 + $0xb98] sm:$0xff]
  %v385 = vld [vmem:[%s1 + $0xba0] sm:$0xff]
  %v386 = vld [vmem:[%s1 + $0xba8] sm:$0xff]
  %v387 = vld [vmem:[%s1 + $0xbb0] sm:$0xff]
  %v388 = vld [vmem:[%s1 + $0xbb8] sm:$0xff]
  %v389 = vld [vmem:[%s1 + $0xbc0] sm:$0xff]
  %v390 = vld [vmem:[%s1 + $0xbc8] sm:$0xff]
  %v391 = vld [vmem:[%s1 + $0xbd0] sm:$0xff]
  %v392 = vld [vmem:[%s1 + $0xbd8] sm:$0xff]
  %v393 = vld [vmem:[%s1 + $0xbe0] sm:$0xff]
  %v394 = vld [vmem:[%s1 + $0xbe8] sm:$0xff]
  %v395 = vld [vmem:[%s1 + $0xbf0] sm:$0xff]
  %v396 = vld [vmem:[%s1 + $0xbf8] sm:$0xff]
  %v397 = vld [vmem:[%s1 + $0xc00] sm:$0xff]
  %v398 = vld [vmem:[%s1 + $0xc08] sm:$0xff]
  %v399 = vld [vmem:[%s1 + $0xc10] sm:$0xff]
  %v400 = vld [vmem:[%s1 + $0xc18] sm:$0xff]
  %v401 = vld [vmem:[%s1 + $0xc20] sm:$0xff]
  %v402 = vld [vmem:[%s1 + $0xc28] sm:$0xff]
  %v403 = vld [vmem:[%s1 + $0xc30] sm:$0xff]
  %v404 = vld [vmem:[%s1 + $0xc38] sm:$0xff]
  %v405 = vld [vmem:[%s1 + $0xc40] sm:$0xff]
  %v406 = vld [vmem:[%s1 + $0xc48] sm:$0xff]
  %v407 = vld [vmem:[%s1 + $0xc50] sm:$0xff]
  %v408 = vld [vmem:[%s1 + $0xc58] sm:$0xff]
  %v409 = vld [vmem:[%s1 + $0xc60] sm:$0xff]
  %v410 = vld [vmem:[%s1 + $0xc68] sm:$0xff]
  %v411 = vld [vmem:[%s1 + $0xc70] sm:$0xff]
  %v412 = vld [vmem:[%s1 + $0xc78] sm:$0xff]
  %v413 = vld [vmem:[%s1 + $0xc80] sm:$0xff]
  %v414 = vld [vmem:[%s1 + $0xc88] sm:$0xff]
  %v415 = vld [vmem:[%s1 + $0xc90] sm:$0xff]
  %v416 = vld [vmem:[%s1 + $0xc98] sm:$0xff]
  %v417 = vld [vmem:[%s1 + $0xca0] sm:$0xff]
  %v418 = vld [vmem:[%s1 + $0xca8] sm:$0xff]
  %v419 = vld [vmem:[%s1 + $0xcb0] sm:$0xff]
  %v420 = vld [vmem:[%s1 + $0xcb8] sm:$0xff]
  %v421 = vld [vmem:[%s1 + $0xcc0] sm:$0xff]
  %v422 = vld [vmem:[%s1 + $0xcc8] sm:$0xff]
  %v423 = vld [vmem:[%s1 + $0xcd0] sm:$0xff]
  %v424 = vld [vmem:[%s1 + $0xcd8] sm:$0xff]
  %v425 = vld [vmem:[%s1 + $0xce0] sm:$0xff]
  %v426 = vld [vmem:[%s1 + $0xce8] sm:$0xff]
  %v427 = vld [vmem:[%s1 + $0xcf0] sm:$0xff]
  %v428 = vld [vmem:[%s1 + $0xcf8] sm:$0xff]
  %v429 = vld [vmem:[%s1 + $0xd00] sm:$0xff]
  %v430 = vld [vmem:[%s1 + $0xd08] sm:$0xff]
  %v431 = vld [vmem:[%s1 + $0xd10] sm:$0xff]
  %v432 = vld [vmem:[%s1 + $0xd18] sm:$0xff]
  %v433 = vld [vmem:[%s1 + $0xd20] sm:$0xff]
  %v434 = vld [vmem:[%s1 + $0xd28] sm:$0xff]
  %v435 = vld [vmem:[%s1 + $0xd30] sm:$0xff]
  %v436 = vld [vmem:[%s1 + $0xd38] sm:$0xff]
  %v437 = vld [vmem:[%s1 + $0xd40] sm:$0xff]
  %v438 = vld [vmem:[%s1 + $0xd48] sm:$0xff]
  %v439 = vld [vmem:[%s1 + $0xd50] sm:$0xff]
  %v440 = vld [vmem:[%s1 + $0xd58] sm:$0xff]
  %v441 = vld [vmem:[%s1 + $0xd60] sm:$0xff]
  %v442 = vld [vmem:[%s1 + $0xd68] sm:$0xff]
  %v443 = vld [vmem:[%s1 + $0xd70] sm:$0xff]
  %v444 = vld [vmem:[%s1 + $0xd78] sm:$0xff]
  %v445 = vld [vmem:[%s1 + $0xd80] sm:$0xff]
  %v446 = vld [vmem:[%s1 + $0xd88] sm:$0xff]
  %v447 = vld [vmem:[%s1 + $0xd90] sm:$0xff]
  %v448 = vld [vmem:[%s1 + $0xd98] sm:$0xff]
  %v449 = vld [vmem:[%s1 + $0xda0] sm:$0xff]
  %v450 = vld [vmem:[%s1 + $0xda8] sm:$0xff]
  %v451 = vld [vmem:[%s1 + $0xdb0] sm:$0xff]
  %v452 = vld [vmem:[%s1 + $0xdb8] sm:$0xff]
  %v453 = vld [vmem:[%s1 + $0xdc0] sm:$0xff]
  %v454 = vld [vmem:[%s1 + $0xdc8] sm:$0xff]
  %v455 = vld [vmem:[%s1 + $0xdd0] sm:$0xff]
  %v456 = vld [vmem:[%s1 + $0xdd8] sm:$0xff]
  %v457 = vld [vmem:[%s1 + $0xde0] sm:$0xff]
  %v458 = vld [vmem:[%s1 + $0xde8] sm:$0xff]
  %v459 = vld [vmem:[%s1 + $0xdf0] sm:$0xff]
  %v460 = vld [vmem:[%s1 + $0xdf8] sm:$0xff]
  %v461 = vld [vmem:[%s1 + $0xe00] sm:$0xff]
  %v462 = vld [vmem:[%s1 + $0xe08] sm:$0xff]
  %v463 = vld [vmem:[%s1 + $0xe10] sm:$0xff]
  %v464 = vld [vmem:[%s1 + $0xe18] sm:$0xff]
  %v465 = vld [vmem:[%s1 + $0xe20] sm:$0xff]
  %v466 = vld [vmem:[%s1 + $0xe28] sm:$0xff]
  %v467 = vld [vmem:[%s1 + $0xe30] sm:$0xff]
  %v468 = vld [vmem:[%s1 + $0xe38] sm:$0xff]
  %v469 = vld [vmem:[%s1 + $0xe40] sm:$0xff]
  %v470 = vld [vmem:[%s1 + $0xe48] sm:$0xff]
  %v471 = vld [vmem:[%s1 + $0xe50] sm:$0xff]
  %v472 = vld [vmem:[%s1 + $0xe58] sm:$0xff]
  %v473 = vld [vmem:[%s1 + $0xe60] sm:$0xff]
  %v474 = vld [vmem:[%s1 + $0xe68] sm:$0xff]
  %v475 = vld [vmem:[%s1 + $0xe70] sm:$0xff]
  %v476 = vld [vmem:[%s1 + $0xe78] sm:$0xff]
  %v477 = vld [vmem:[%s1 + $0xe80] sm:$0xff]
  %v478 = vld [vmem:[%s1 + $0xe88] sm:$0xff]
  %v479 = vld [vmem:[%s1 + $0xe90] sm:$0xff]
  %v480 = vld [vmem:[%s1 + $0xe98] sm:$0xff]
  %v481 = vld [vmem:[%s1 + $0xea0] sm:$0xff]
  %v482 = vld [vmem:[%s1 + $0xea8] sm:$0xff]
  %v483 = vld [vmem:[%s1 + $0xeb0] sm:$0xff]
  %v484 = vld [vmem:[%s1 + $0xeb8] sm:$0xff]
  %v485 = vld [vmem:[%s1 + $0xec0] sm:$0xff]
  %v486 = vld [vmem:[%s1 + $0xec8] sm:$0xff]
  %v487 = vld [vmem:[%s1 + $0xed0] sm:$0xff]
  %v488 = vld [vmem:[%s1 + $0xed8] sm:$0xff]
  %v489 = vld [vmem:[%s1 + $0xee0] sm:$0xff]
  %v490 = vld [vmem:[%s1 + $0xee8] sm:$0xff]
  %v491 = vld [vmem:[%s1 + $0xef0] sm:$0xff]
  %v492 = vld [vmem:[%s1 + $0xef8] sm:$0xff]
  %v493 = vld [vmem:[%s1 + $0xf00] sm:$0xff]
  %v494 = vld [vmem:[%s1 + $0xf08] sm:$0xff]
  %v495 = vld [vmem:[%s1 + $0xf10] sm:$0xff]
  %v496 = vld [vmem:[%s1 + $0xf18] sm:$0xff]
  %v497 = vld [vmem:[%s1 + $0xf20] sm:$0xff]
  %v498 = vld [vmem:[%s1 + $0xf28] sm:$0xff]
  %v499 = vld [vmem:[%s1 + $0xf30] sm:$0xff]
  %v500 = vld [vmem:[%s1 + $0xf38] sm:$0xff]
  %v501 = vld [vmem:[%s1 + $0xf40] sm:$0xff]
  %v502 = vld [vmem:[%s1 + $0xf48] sm:$0xff]
  %v503 = vld [vmem:[%s1 + $0xf50] sm:$0xff]
  %v504 = vld [vmem:[%s1 + $0xf58] sm:$0xff]
  %v505 = vld [vmem:[%s1 + $0xf60] sm:$0xff]
  %v506 = vld [vmem:[%s1 + $0xf68] sm:$0xff]
  %v507 = vld [vmem:[%s1 + $0xf70] sm:$0xff]
  %v508 = vld [vmem:[%s1 + $0xf78] sm:$0xff]
  %v509 = vld [vmem:[%s1 + $0xf80] sm:$0xff]
  %v510 = vld [vmem:[%s1 + $0xf88] sm:$0xff]
  %v511 = vld [vmem:[%s1 + $0xf90] sm:$0xff]
  %v512 = vld [vmem:[%s1 + $0xf98] sm:$0xff]
  %v513 = vld [vmem:[%s1 + $0xfa0] sm:$0xff]
  %v514 = vld [vmem:[%s1 + $0xfa8] sm:$0xff]
  %v515 = vld [vmem:[%s1 + $0xfb0] sm:$0xff]
  %v516 = vld [vmem:[%s1 + $0xfb8] sm:$0xff]
  %v517 = vld [vmem:[%s1 + $0xfc0] sm:$0xff]
  %v518 = vld [vmem:[%s1 + $0xfc8] sm:$0xff]
  %v519 = vld [vmem:[%s1 + $0xfd0] sm:$0xff]
  %v520 = vld [vmem:[%s1 + $0xfd8] sm:$0xff]
  %v521 = vld [vmem:[%s1 + $0xfe0] sm:$0xff]
  %v522 = vld [vmem:[%s1 + $0xfe8] sm:$0xff]
  %v523 = vld [vmem:[%s1 + $0xff0] sm:$0xff]
  %v524 = vld [vmem:[%s1 + $0xff8] sm:$0xff]
  %v525 = vld [vmem:[%s1 + $0x1000] sm:$0xff]
  %v526 = vld [vmem:[%s1 + $0x1008] sm:$0xff]
  %v527 = vld [vmem:[%s1 + $0x1010] sm:$0xff]
  %v528 = vld [vmem:[%s1 + $0x1018] sm:$0xff]
  %v529 = vld [vmem:[%s1 + $0x1020] sm:$0xff]
  %v530 = vld [vmem:[%s1 + $0x1028] sm:$0xff]
  %v531 = vld [vmem:[%s1 + $0x1030] sm:$0xff]
  %v532 = vld [vmem:[%s1 + $0x1038] sm:$0xff]
  %v533 = vld [vmem:[%s1 + $0x1040] sm:$0xff]
  %v534 = vld [vmem:[%s1 + $0x1048] sm:$0xff]
  %v535 = vld [vmem:[%s1 + $0x1050] sm:$0xff]
  %v536 = vld [vmem:[%s1 + $0x1058] sm:$0xff]
  %v537 = vld [vmem:[%s1 + $0x1060] sm:$0xff]
  %v538 = vld [vmem:[%s1 + $0x1068] sm:$0xff]
  %v539 = vld [vmem:[%s1 + $0x1070] sm:$0xff]
  %v540 = vld [vmem:[%s1 + $0x1078] sm:$0xff]
  %v541 = vld [vmem:[%s1 + $0x1080] sm:$0xff]
  %v542 = vld [vmem:[%s1 + $0x1088] sm:$0xff]
  %v543 = vld [vmem:[%s1 + $0x1090] sm:$0xff]
  %v544 = vld [vmem:[%s1 + $0x1098] sm:$0xff]
  %v545 = vld [vmem:[%s1 + $0x10a0] sm:$0xff]
  %v546 = vld [vmem:[%s1 + $0x10a8] sm:$0xff]
  %v547 = vld [vmem:[%s1 + $0x10b0] sm:$0xff]
  %v548 = vld [vmem:[%s1 + $0x10b8] sm:$0xff]
  %v549 = vld [vmem:[%s1 + $0x10c0] sm:$0xff]
  %v550 = vld [vmem:[%s1 + $0x10c8] sm:$0xff]
  %v551 = vld [vmem:[%s1 + $0x10d0] sm:$0xff]
  %v552 = vld [vmem:[%s1 + $0x10d8] sm:$0xff]
  %v553 = vld [vmem:[%s1 + $0x10e0] sm:$0xff]
  %v554 = vld [vmem:[%s1 + $0x10e8] sm:$0xff]
  %v555 = vld [vmem:[%s1 + $0x10f0] sm:$0xff]
  %v556 = vld [vmem:[%s1 + $0x10f8] sm:$0xff]
  %v557 = vld [vmem:[%s1 + $0x1100] sm:$0xff]
  %v558 = vld [vmem:[%s1 + $0x1108] sm:$0xff]
  %v559 = vld [vmem:[%s1 + $0x1110] sm:$0xff]
  %v560 = vld [vmem:[%s1 + $0x1118] sm:$0xff]
  %v561 = vld [vmem:[%s1 + $0x1120] sm:$0xff]
  %v562 = vld [vmem:[%s1 + $0x1128] sm:$0xff]
  %v563 = vld [vmem:[%s1 + $0x1130] sm:$0xff]
  %v564 = vld [vmem:[%s1 + $0x1138] sm:$0xff]
  %v565 = vld [vmem:[%s1 + $0x1140] sm:$0xff]
  %v566 = vld [vmem:[%s1 + $0x1148] sm:$0xff]
  %v567 = vld [vmem:[%s1 + $0x1150] sm:$0xff]
  %v568 = vld [vmem:[%s1 + $0x1158] sm:$0xff]
  %v569 = vld [vmem:[%s1 + $0x1160] sm:$0xff]
  %v570 = vld [vmem:[%s1 + $0x1168] sm:$0xff]
  %v571 = vld [vmem:[%s1 + $0x1170] sm:$0xff]
  %v572 = vld [vmem:[%s1 + $0x1178] sm:$0xff]
  %v573 = vld [vmem:[%s1 + $0x1180] sm:$0xff]
  %v574 = vld [vmem:[%s1 + $0x1188] sm:$0xff]
  %v575 = vld [vmem:[%s1 + $0x1190] sm:$0xff]
  %v576 = vld [vmem:[%s1 + $0x1198] sm:$0xff]
  %v577 = vld [vmem:[%s1 + $0x11a0] sm:$0xff]
  %v578 = vld [vmem:[%s1 + $0x11a8] sm:$0xff]
  %v579 = vld [vmem:[%s1 + $0x11b0] sm:$0xff]
  %v580 = vld [vmem:[%s1 + $0x11b8] sm:$0xff]
  %v581 = vld [vmem:[%s1 + $0x11c0] sm:$0xff]
  %v582 = vld [vmem:[%s1 + $0x11c8] sm:$0xff]
  %v583 = vld [vmem:[%s1 + $0x11d0] sm:$0xff]
  %v584 = vld [vmem:[%s1 + $0x11d8] sm:$0xff]
  %v585 = vld [vmem:[%s1 + $0x11e0] sm:$0xff]
  %v586 = vld [vmem:[%s1 + $0x11e8] sm:$0xff]
  %v587 = vld [vmem:[%s1 + $0x11f0] sm:$0xff]
  %v588 = vld [vmem:[%s1 + $0x11f8] sm:$0xff]
  %v589 = vld [vmem:[%s1 + $0x1200] sm:$0xff]
  %v590 = vld [vmem:[%s1 + $0x1208] sm:$0xff]
  %v591 = vld [vmem:[%s1 + $0x1210] sm:$0xff]
  %v592 = vld [vmem:[%s1 + $0x1218] sm:$0xff]
  %v593 = vld [vmem:[%s1 + $0x1220] sm:$0xff]
  %v594 = vld [vmem:[%s1 + $0x1228] sm:$0xff]
  %v595 = vld [vmem:[%s1 + $0x1230] sm:$0xff]
  %v596 = vld [vmem:[%s1 + $0x1238] sm:$0xff]
  %v597 = vld [vmem:[%s1 + $0x1240] sm:$0xff]
  %v598 = vld [vmem:[%s1 + $0x1248] sm:$0xff]
  %v599 = vld [vmem:[%s1 + $0x1250] sm:$0xff]
  %v600 = vld [vmem:[%s1 + $0x1258] sm:$0xff]
  %v601 = vld [vmem:[%s1 + $0x1260] sm:$0xff]
  %v602 = vld [vmem:[%s1 + $0x1268] sm:$0xff]
  %v603 = vld [vmem:[%s1 + $0x1270] sm:$0xff]
  %v604 = vld [vmem:[%s1 + $0x1278] sm:$0xff]
  %v605 = vld [vmem:[%s1 + $0x1280] sm:$0xff]
  %v606 = vld [vmem:[%s1 + $0x1288] sm:$0xff]
  %v607 = vld [vmem:[%s1 + $0x1290] sm:$0xff]
  %v608 = vld [vmem:[%s1 + $0x1298] sm:$0xff]
  %v609 = vld [vmem:[%s1 + $0x12a0] sm:$0xff]
  %v610 = vld [vmem:[%s1 + $0x12a8] sm:$0xff]
  %v611 = vld [vmem:[%s1 + $0x12b0] sm:$0xff]
  %v612 = vld [vmem:[%s1 + $0x12b8] sm:$0xff]
  %v613 = vld [vmem:[%s1 + $0x12c0] sm:$0xff]
  %v614 = vld [vmem:[%s1 + $0x12c8] sm:$0xff]
  %v615 = vld [vmem:[%s1 + $0x12d0] sm:$0xff]
  %v616 = vld [vmem:[%s1 + $0x12d8] sm:$0xff]
  %v617 = vld [vmem:[%s1 + $0x12e0] sm:$0xff]
  %v618 = vld [vmem:[%s1 + $0x12e8] sm:$0xff]
  %v619 = vld [vmem:[%s1 + $0x12f0] sm:$0xff]
  %v620 = vld [vmem:[%s1 + $0x12f8] sm:$0xff]
  %v621 = vld [vmem:[%s1 + $0x1300] sm:$0xff]
  %v622 = vld [vmem:[%s1 + $0x1308] sm:$0xff]
  %v623 = vld [vmem:[%s1 + $0x1310] sm:$0xff]
  %v624 = vld [vmem:[%s1 + $0x1318] sm:$0xff]
  %v625 = vld [vmem:[%s1 + $0x1320] sm:$0xff]
  %v626 = vld [vmem:[%s1 + $0x1328] sm:$0xff]
  %v627 = vld [vmem:[%s1 + $0x1330] sm:$0xff]
  %v628 = vld [vmem:[%s1 + $0x1338] sm:$0xff]
  %v629 = vld [vmem:[%s1 + $0x1340] sm:$0xff]
  %v630 = vld [vmem:[%s1 + $0x1348] sm:$0xff]
  %v631 = vld [vmem:[%s1 + $0x1350] sm:$0xff]
  %v632 = vld [vmem:[%s1 + $0x1358] sm:$0xff]
  %v633 = vld [vmem:[%s1 + $0x1360] sm:$0xff]
  %v634 = vld [vmem:[%s1 + $0x1368] sm:$0xff]
  %v635 = vld [vmem:[%s1 + $0x1370] sm:$0xff]
  %v636 = vld [vmem:[%s1 + $0x1378] sm:$0xff]
  %v637 = vld [vmem:[%s1 + $0x1380] sm:$0xff]
  %v638 = vld [vmem:[%s1 + $0x1388] sm:$0xff]
  %v639 = vld [vmem:[%s1 + $0x1390] sm:$0xff]
  %v640 = vld [vmem:[%s1 + $0x1398] sm:$0xff]
  %v641 = vld [vmem:[%s1 + $0x13a0] sm:$0xff]
  %v642 = vld [vmem:[%s1 + $0x13a8] sm:$0xff]
  %v643 = vld [vmem:[%s1 + $0x13b0] sm:$0xff]
  %v644 = vld [vmem:[%s1 + $0x13b8] sm:$0xff]
  %v645 = vld [vmem:[%s1 + $0x13c0] sm:$0xff]
  %v646 = vld [vmem:[%s1 + $0x13c8] sm:$0xff]
  %v647 = vld [vmem:[%s1 + $0x13d0] sm:$0xff]
  %v648 = vld [vmem:[%s1 + $0x13d8] sm:$0xff]
  %v649 = vld [vmem:[%s1 + $0x13e0] sm:$0xff]
  %v650 = vld [vmem:[%s1 + $0x13e8] sm:$0xff]
  %v651 = vld [vmem:[%s1 + $0x13f0] sm:$0xff]
  %v652 = vld [vmem:[%s1 + $0x13f8] sm:$0xff]
  %v653 = vld [vmem:[%s1 + $0x1400] sm:$0xff]
  %v654 = vld [vmem:[%s1 + $0x1408] sm:$0xff]
  %v655 = vld [vmem:[%s1 + $0x1410] sm:$0xff]
  %v656 = vld [vmem:[%s1 + $0x1418] sm:$0xff]
  %v657 = vld [vmem:[%s1 + $0x1420] sm:$0xff]
  %v658 = vld [vmem:[%s1 + $0x1428] sm:$0xff]
  %v659 = vld [vmem:[%s1 + $0x1430] sm:$0xff]
  %v660 = vld [vmem:[%s1 + $0x1438] sm:$0xff]
  %v661 = vld [vmem:[%s1 + $0x1440] sm:$0xff]
  %v662 = vld [vmem:[%s1 + $0x1448] sm:$0xff]
  %v663 = vld [vmem:[%s1 + $0x1450] sm:$0xff]
  %v664 = vld [vmem:[%s1 + $0x1458] sm:$0xff]
  %v665 = vld [vmem:[%s1 + $0x1460] sm:$0xff]
  %v666 = vld [vmem:[%s1 + $0x1468] sm:$0xff]
  %v667 = vld [vmem:[%s1 + $0x1470] sm:$0xff]
  %v668 = vld [vmem:[%s1 + $0x1478] sm:$0xff]
  %v669 = vld [vmem:[%s1 + $0x1480] sm:$0xff]
  %v670 = vld [vmem:[%s1 + $0x1488] sm:$0xff]
  %v671 = vld [vmem:[%s1 + $0x1490] sm:$0xff]
  %v672 = vld [vmem:[%s1 + $0x1498] sm:$0xff]
  %v673 = vld [vmem:[%s1 + $0x14a0] sm:$0xff]
  %v674 = vld [vmem:[%s1 + $0x14a8] sm:$0xff]
  %v675 = vld [vmem:[%s1 + $0x14b0] sm:$0xff]
  %v676 = vld [vmem:[%s1 + $0x14b8] sm:$0xff]
  %v677 = vld [vmem:[%s1 + $0x14c0] sm:$0xff]
  %v678 = vld [vmem:[%s1 + $0x14c8] sm:$0xff]
  %v679 = vld [vmem:[%s1 + $0x14d0] sm:$0xff]
  %v680 = vld [vmem:[%s1 + $0x14d8] sm:$0xff]
  %v681 = vld [vmem:[%s1 + $0x14e0] sm:$0xff]
  %v682 = vld [vmem:[%s1 + $0x14e8] sm:$0xff]
  %v683 = vld [vmem:[%s1 + $0x14f0] sm:$0xff]
  %v684 = vld [vmem:[%s1 + $0x14f8] sm:$0xff]
  %v685 = vld [vmem:[%s1 + $0x1500] sm:$0xff]
  %v686 = vld [vmem:[%s1 + $0x1508] sm:$0xff]
  %v687 = vld [vmem:[%s1 + $0x1510] sm:$0xff]
  %v688 = vld [vmem:[%s1 + $0x1518] sm:$0xff]
  %v689 = vld [vmem:[%s1 + $0x1520] sm:$0xff]
  %v690 = vld [vmem:[%s1 + $0x1528] sm:$0xff]
  %v691 = vld [vmem:[%s1 + $0x1530] sm:$0xff]
  %v692 = vld [vmem:[%s1 + $0x1538] sm:$0xff]
  %v693 = vld [vmem:[%s1 + $0x1540] sm:$0xff]
  %v694 = vld [vmem:[%s1 + $0x1548] sm:$0xff]
  %v695 = vld [vmem:[%s1 + $0x1550] sm:$0xff]
  %v696 = vld [vmem:[%s1 + $0x1558] sm:$0xff]
  %v697 = vld [vmem:[%s1 + $0x1560] sm:$0xff]
  %v698 = vld [vmem:[%s1 + $0x1568] sm:$0xff]
  %v699 = vld [vmem:[%s1 + $0x1570] sm:$0xff]
  %v700 = vld [vmem:[%s1 + $0x1578] sm:$0xff]
  %v701 = vld [vmem:[%s1 + $0x1580] sm:$0xff]
  %v702 = vld [vmem:[%s1 + $0x1588] sm:$0xff]
  %v703 = vld [vmem:[%s1 + $0x1590] sm:$0xff]
  %v704 = vld [vmem:[%s1 + $0x1598] sm:$0xff]
  %v705 = vld [vmem:[%s1 + $0x15a0] sm:$0xff]
  %v706 = vld [vmem:[%s1 + $0x15a8] sm:$0xff]
  %v707 = vld [vmem:[%s1 + $0x15b0] sm:$0xff]
  %v708 = vld [vmem:[%s1 + $0x15b8] sm:$0xff]
  %v709 = vld [vmem:[%s1 + $0x15c0] sm:$0xff]
  %v710 = vld [vmem:[%s1 + $0x15c8] sm:$0xff]
  %v711 = vld [vmem:[%s1 + $0x15d0] sm:$0xff]
  %v712 = vld [vmem:[%s1 + $0x15d8] sm:$0xff]
  %v713 = vld [vmem:[%s1 + $0x15e0] sm:$0xff]
  %v714 = vld [vmem:[%s1 + $0x15e8] sm:$0xff]
  %v715 = vld [vmem:[%s1 + $0x15f0] sm:$0xff]
  %v716 = vld [vmem:[%s1 + $0x15f8] sm:$0xff]
  %v717 = vld [vmem:[%s1 + $0x1600] sm:$0xff]
  %v718 = vld [vmem:[%s1 + $0x1608] sm:$0xff]
  %v719 = vld [vmem:[%s1 + $0x1610] sm:$0xff]
  %v720 = vld [vmem:[%s1 + $0x1618] sm:$0xff]
  %v721 = vld [vmem:[%s1 + $0x1620] sm:$0xff]
  %v722 = vld [vmem:[%s1 + $0x1628] sm:$0xff]
  %v723 = vld [vmem:[%s1 + $0x1630] sm:$0xff]
  %v724 = vld [vmem:[%s1 + $0x1638] sm:$0xff]
  %v725 = vld [vmem:[%s1 + $0x1640] sm:$0xff]
  %v726 = vld [vmem:[%s1 + $0x1648] sm:$0xff]
  %v727 = vld [vmem:[%s1 + $0x1650] sm:$0xff]
  %v728 = vld [vmem:[%s1 + $0x1658] sm:$0xff]
  %v729 = vld [vmem:[%s1 + $0x1660] sm:$0xff]
  %v730 = vld [vmem:[%s1 + $0x1668] sm:$0xff]
  %v731 = vld [vmem:[%s1 + $0x1670] sm:$0xff]
  %v732 = vld [vmem:[%s1 + $0x1678] sm:$0xff]
  %v733 = vld [vmem:[%s1 + $0x1680] sm:$0xff]
  %v734 = vld [vmem:[%s1 + $0x1688] sm:$0xff]
  %v735 = vld [vmem:[%s1 + $0x1690] sm:$0xff]
  %v736 = vld [vmem:[%s1 + $0x1698] sm:$0xff]
  %v737 = vld [vmem:[%s1 + $0x16a0] sm:$0xff]
  %v738 = vld [vmem:[%s1 + $0x16a8] sm:$0xff]
  %v739 = vld [vmem:[%s1 + $0x16b0] sm:$0xff]
  %v740 = vld [vmem:[%s1 + $0x16b8] sm:$0xff]
  %v741 = vld [vmem:[%s1 + $0x16c0] sm:$0xff]
  %v742 = vld [vmem:[%s1 + $0x16c8] sm:$0xff]
  %v743 = vld [vmem:[%s1 + $0x16d0] sm:$0xff]
  %v744 = vld [vmem:[%s1 + $0x16d8] sm:$0xff]
  %v745 = vld [vmem:[%s1 + $0x16e0] sm:$0xff]
  %v746 = vld [vmem:[%s1 + $0x16e8] sm:$0xff]
  %v747 = vld [vmem:[%s1 + $0x16f0] sm:$0xff]
  %v748 = vld [vmem:[%s1 + $0x16f8] sm:$0xff]
  %v749 = vld [vmem:[%s1 + $0x1700] sm:$0xff]
  %v750 = vld [vmem:[%s1 + $0x1708] sm:$0xff]
  %v751 = vld [vmem:[%s1 + $0x1710] sm:$0xff]
  %v752 = vld [vmem:[%s1 + $0x1718] sm:$0xff]
  %v753 = vld [vmem:[%s1 + $0x1720] sm:$0xff]
  %v754 = vld [vmem:[%s1 + $0x1728] sm:$0xff]
  %v755 = vld [vmem:[%s1 + $0x1730] sm:$0xff]
  %v756 = vld [vmem:[%s1 + $0x1738] sm:$0xff]
  %v757 = vld [vmem:[%s1 + $0x1740] sm:$0xff]
  %v758 = vld [vmem:[%s1 + $0x1748] sm:$0xff]
  %v759 = vld [vmem:[%s1 + $0x1750] sm:$0xff]
  %v760 = vld [vmem:[%s1 + $0x1758] sm:$0xff]
  %v761 = vld [vmem:[%s1 + $0x1760] sm:$0xff]
  %v762 = vld [vmem:[%s1 + $0x1768] sm:$0xff]
  %v763 = vld [vmem:[%s1 + $0x1770] sm:$0xff]
  %v764 = vld [vmem:[%s1 + $0x1778] sm:$0xff]
  %v765 = vld [vmem:[%s1 + $0x1780] sm:$0xff]
  %v766 = vld [vmem:[%s1 + $0x1788] sm:$0xff]
  %v767 = vld [vmem:[%s1 + $0x1790] sm:$0xff]
  %v768 = vld [vmem:[%s1 + $0x1798] sm:$0xff]
  %v769 = vld [vmem:[%s1 + $0x17a0] sm:$0xff]
  %v770 = vld [vmem:[%s1 + $0x17a8] sm:$0xff]
  %v771 = vld [vmem:[%s1 + $0x17b0] sm:$0xff]
  %v772 = vld [vmem:[%s1 + $0x17b8] sm:$0xff]
  %v773 = vld [vmem:[%s1 + $0x17c0] sm:$0xff]
  %v774 = vld [vmem:[%s1 + $0x17c8] sm:$0xff]
  %v775 = vld [vmem:[%s1 + $0x17d0] sm:$0xff]
  %v776 = vld [vmem:[%s1 + $0x17d8] sm:$0xff]
  %v777 = vld [vmem:[%s1 + $0x17e0] sm:$0xff]
  %v778 = vld [vmem:[%s1 + $0x17e8] sm:$0xff]
  %v779 = vld [vmem:[%s1 + $0x17f0] sm:$0xff]
  %v780 = vld [vmem:[%s1 + $0x17f8] sm:$0xff]
  %v781 = vld [vmem:[%s1 + $0x1800] sm:$0xff]
  %v782 = vld [vmem:[%s1 + $0x1808] sm:$0xff]
  %v783 = vld [vmem:[%s1 + $0x1810] sm:$0xff]
  %v784 = vld [vmem:[%s1 + $0x1818] sm:$0xff]
  %v785 = vld [vmem:[%s1 + $0x1820] sm:$0xff]
  %v786 = vld [vmem:[%s1 + $0x1828] sm:$0xff]
  %v787 = vld [vmem:[%s1 + $0x1830] sm:$0xff]
  %v788 = vld [vmem:[%s1 + $0x1838] sm:$0xff]
  %v789 = vld [vmem:[%s1 + $0x1840] sm:$0xff]
  %v790 = vld [vmem:[%s1 + $0x1848] sm:$0xff]
  %v791 = vld [vmem:[%s1 + $0x1850] sm:$0xff]
  %v792 = vld [vmem:[%s1 + $0x1858] sm:$0xff]
  %v793 = vld [vmem:[%s1 + $0x1860] sm:$0xff]
  %v794 = vld [vmem:[%s1 + $0x1868] sm:$0xff]
  %v795 = vld [vmem:[%s1 + $0x1870] sm:$0xff]
  %v796 = vld [vmem:[%s1 + $0x1878] sm:$0xff]
  %v797 = vld [vmem:[%s1 + $0x1880] sm:$0xff]
  %v798 = vld [vmem:[%s1 + $0x1888] sm:$0xff]
  %v799 = vld [vmem:[%s1 + $0x1890] sm:$0xff]
  %v800 = vld [vmem:[%s1 + $0x1898] sm:$0xff]
  %v801 = vld [vmem:[%s1 + $0x18a0] sm:$0xff]
  %v802 = vld [vmem:[%s1 + $0x18a8] sm:$0xff]
  %v803 = vld [vmem:[%s1 + $0x18b0] sm:$0xff]
  %v804 = vld [vmem:[%s1 + $0x18b8] sm:$0xff]
  %v805 = vld [vmem:[%s1 + $0x18c0] sm:$0xff]
  %v806 = vld [vmem:[%s1 + $0x18c8] sm:$0xff]
  %v807 = vld [vmem:[%s1 + $0x18d0] sm:$0xff]
  %v808 = vld [vmem:[%s1 + $0x18d8] sm:$0xff]
  %v809 = vld [vmem:[%s1 + $0x18e0] sm:$0xff]
  %v810 = vld [vmem:[%s1 + $0x18e8] sm:$0xff]
  %v811 = vld [vmem:[%s1 + $0x18f0] sm:$0xff]
  %v812 = vld [vmem:[%s1 + $0x18f8] sm:$0xff]
  %v813 = vld [vmem:[%s1 + $0x1900] sm:$0xff]
  %v814 = vld [vmem:[%s1 + $0x1908] sm:$0xff]
  %v815 = vld [vmem:[%s1 + $0x1910] sm:$0xff]
  %v816 = vld [vmem:[%s1 + $0x1918] sm:$0xff]
  %v817 = vld [vmem:[%s1 + $0x1920] sm:$0xff]
  %v818 = vld [vmem:[%s1 + $0x1928] sm:$0xff]
  %v819 = vld [vmem:[%s1 + $0x1930] sm:$0xff]
  %v820 = vld [vmem:[%s1 + $0x1938] sm:$0xff]
  %v821 = vld [vmem:[%s1 + $0x1940] sm:$0xff]
  %v822 = vld [vmem:[%s1 + $0x1948] sm:$0xff]
  %v823 = vld [vmem:[%s1 + $0x1950] sm:$0xff]
  %v824 = vld [vmem:[%s1 + $0x1958] sm:$0xff]
  %v825 = vld [vmem:[%s1 + $0x1960] sm:$0xff]
  %v826 = vld [vmem:[%s1 + $0x1968] sm:$0xff]
  %v827 = vld [vmem:[%s1 + $0x1970] sm:$0xff]
  %v828 = vld [vmem:[%s1 + $0x1978] sm:$0xff]
  %v829 = vld [vmem:[%s1 + $0x1980] sm:$0xff]
  %v830 = vld [vmem:[%s1 + $0x1988] sm:$0xff]
  %v831 = vld [vmem:[%s1 + $0x1990] sm:$0xff]
  %v832 = vld [vmem:[%s1 + $0x1998] sm:$0xff]
  %v833 = vld [vmem:[%s1 + $0x19a0] sm:$0xff]
  %v834 = vld [vmem:[%s1 + $0x19a8] sm:$0xff]
  %v835 = vld [vmem:[%s1 + $0x19b0] sm:$0xff]
  %v836 = vld [vmem:[%s1 + $0x19b8] sm:$0xff]
  %v837 = vld [vmem:[%s1 + $0x19c0] sm:$0xff]
  %v838 = vld [vmem:[%s1 + $0x19c8] sm:$0xff]
  %v839 = vld [vmem:[%s1 + $0x19d0] sm:$0xff]
  %v840 = vld [vmem:[%s1 + $0x19d8] sm:$0xff]
  %v841 = vld [vmem:[%s1 + $0x19e0] sm:$0xff]
  %v842 = vld [vmem:[%s1 + $0x19e8] sm:$0xff]
  %v843 = vld [vmem:[%s1 + $0x19f0] sm:$0xff]
  %v844 = vld [vmem:[%s1 + $0x19f8] sm:$0xff]
  %v845 = vld [vmem:[%s1 + $0x1a00] sm:$0xff]
  %v846 = vld [vmem:[%s1 + $0x1a08] sm:$0xff]
  %v847 = vld [vmem:[%s1 + $0x1a10] sm:$0xff]
  %v848 = vld [vmem:[%s1 + $0x1a18] sm:$0xff]
  %v849 = vld [vmem:[%s1 + $0x1a20] sm:$0xff]
  %v850 = vld [vmem:[%s1 + $0x1a28] sm:$0xff]
  %v851 = vld [vmem:[%s1 + $0x1a30] sm:$0xff]
  %v852 = vld [vmem:[%s1 + $0x1a38] sm:$0xff]
  %v853 = vld [vmem:[%s1 + $0x1a40] sm:$0xff]
  %v854 = vld [vmem:[%s1 + $0x1a48] sm:$0xff]
  %v855 = vld [vmem:[%s1 + $0x1a50] sm:$0xff]
  %v856 = vld [vmem:[%s1 + $0x1a58] sm:$0xff]
  %v857 = vld [vmem:[%s1 + $0x1a60] sm:$0xff]
  %v858 = vld [vmem:[%s1 + $0x1a68] sm:$0xff]
  %v859 = vld [vmem:[%s1 + $0x1a70] sm:$0xff]
  %v860 = vld [vmem:[%s1 + $0x1a78] sm:$0xff]
  %v861 = vld [vmem:[%s1 + $0x1a80] sm:$0xff]
  %v862 = vld [vmem:[%s1 + $0x1a88] sm:$0xff]
  %v863 = vld [vmem:[%s1 + $0x1a90] sm:$0xff]
  %v864 = vld [vmem:[%s1 + $0x1a98] sm:$0xff]
  %v865 = vld [vmem:[%s1 + $0x1aa0] sm:$0xff]
  %v866 = vld [vmem:[%s1 + $0x1aa8] sm:$0xff]
  %v867 = vld [vmem:[%s1 + $0x1ab0] sm:$0xff]
  %v868 = vld [vmem:[%s1 + $0x1ab8] sm:$0xff]
  %v869 = vld [vmem:[%s1 + $0x1ac0] sm:$0xff]
  %v870 = vld [vmem:[%s1 + $0x1ac8] sm:$0xff]
  %v871 = vld [vmem:[%s1 + $0x1ad0] sm:$0xff]
  %v872 = vld [vmem:[%s1 + $0x1ad8] sm:$0xff]
  %v873 = vld [vmem:[%s1 + $0x1ae0] sm:$0xff]
  %v874 = vld [vmem:[%s1 + $0x1ae8] sm:$0xff]
  %v875 = vld [vmem:[%s1 + $0x1af0] sm:$0xff]
  %v876 = vld [vmem:[%s1 + $0x1af8] sm:$0xff]
  %v877 = vld [vmem:[%s1 + $0x1b00] sm:$0xff]
  %v878 = vld [vmem:[%s1 + $0x1b08] sm:$0xff]
  %v879 = vld [vmem:[%s1 + $0x1b10] sm:$0xff]
  %v880 = vld [vmem:[%s1 + $0x1b18] sm:$0xff]
  %v881 = vld [vmem:[%s1 + $0x1b20] sm:$0xff]
  %v882 = vld [vmem:[%s1 + $0x1b28] sm:$0xff]
  %v883 = vld [vmem:[%s1 + $0x1b30] sm:$0xff]
  %v884 = vld [vmem:[%s1 + $0x1b38] sm:$0xff]
  %v885 = vld [vmem:[%s1 + $0x1b40] sm:$0xff]
  %v886 = vld [vmem:[%s1 + $0x1b48] sm:$0xff]
  %v887 = vld [vmem:[%s1 + $0x1b50] sm:$0xff]
  %v888 = vld [vmem:[%s1 + $0x1b58] sm:$0xff]
  %v889 = vld [vmem:[%s1 + $0x1b60] sm:$0xff]
  %v890 = vld [vmem:[%s1 + $0x1b68] sm:$0xff]
  %v891 = vld [vmem:[%s1 + $0x1b70] sm:$0xff]
  %v892 = vld [vmem:[%s1 + $0x1b78] sm:$0xff]
  %v893 = vld [vmem:[%s1 + $0x1b80] sm:$0xff]
  %v894 = vld [vmem:[%s1 + $0x1b88] sm:$0xff]
  %v895 = vld [vmem:[%s1 + $0x1b90] sm:$0xff]
  %v896 = vld [vmem:[%s1 + $0x1b98] sm:$0xff]
  %v897 = vld [vmem:[%s1 + $0x1ba0] sm:$0xff]
  %v898 = vld [vmem:[%s1 + $0x1ba8] sm:$0xff]
  %v899 = vld [vmem:[%s1 + $0x1bb0] sm:$0xff]
  %v900 = vld [vmem:[%s1 + $0x1bb8] sm:$0xff]
  %v901 = vld [vmem:[%s1 + $0x1bc0] sm:$0xff]
  %v902 = vld [vmem:[%s1 + $0x1bc8] sm:$0xff]
  %v903 = vld [vmem:[%s1 + $0x1bd0] sm:$0xff]
  %v904 = vld [vmem:[%s1 + $0x1bd8] sm:$0xff]
  %v905 = vld [vmem:[%s1 + $0x1be0] sm:$0xff]
  %v906 = vld [vmem:[%s1 + $0x1be8] sm:$0xff]
  %v907 = vld [vmem:[%s1 + $0x1bf0] sm:$0xff]
  %v908 = vld [vmem:[%s1 + $0x1bf8] sm:$0xff]
  %v909 = vld [vmem:[%s1 + $0x1c00] sm:$0xff]
  %v910 = vld [vmem:[%s1 + $0x1c08] sm:$0xff]
  %v911 = vld [vmem:[%s1 + $0x1c10] sm:$0xff]
  %v912 = vld [vmem:[%s1 + $0x1c18] sm:$0xff]
  %v913 = vld [vmem:[%s1 + $0x1c20] sm:$0xff]
  %v914 = vld [vmem:[%s1 + $0x1c28] sm:$0xff]
  %v915 = vld [vmem:[%s1 + $0x1c30] sm:$0xff]
  %v916 = vld [vmem:[%s1 + $0x1c38] sm:$0xff]
  %v917 = vld [vmem:[%s1 + $0x1c40] sm:$0xff]
  %v918 = vld [vmem:[%s1 + $0x1c48] sm:$0xff]
  %v919 = vld [vmem:[%s1 + $0x1c50] sm:$0xff]
  %v920 = vld [vmem:[%s1 + $0x1c58] sm:$0xff]
  %v921 = vld [vmem:[%s1 + $0x1c60] sm:$0xff]
  %v922 = vld [vmem:[%s1 + $0x1c68] sm:$0xff]
  %v923 = vld [vmem:[%s1 + $0x1c70] sm:$0xff]
  %v924 = vld [vmem:[%s1 + $0x1c78] sm:$0xff]
  %v925 = vld [vmem:[%s1 + $0x1c80] sm:$0xff]
  %v926 = vld [vmem:[%s1 + $0x1c88] sm:$0xff]
  %v927 = vld [vmem:[%s1 + $0x1c90] sm:$0xff]
  %v928 = vld [vmem:[%s1 + $0x1c98] sm:$0xff]
  %v929 = vld [vmem:[%s1 + $0x1ca0] sm:$0xff]
  %v930 = vld [vmem:[%s1 + $0x1ca8] sm:$0xff]
  %v931 = vld [vmem:[%s1 + $0x1cb0] sm:$0xff]
  %v932 = vld [vmem:[%s1 + $0x1cb8] sm:$0xff]
  %v933 = vld [vmem:[%s1 + $0x1cc0] sm:$0xff]
  %v934 = vld [vmem:[%s1 + $0x1cc8] sm:$0xff]
  %v935 = vld [vmem:[%s1 + $0x1cd0] sm:$0xff]
  %v936 = vld [vmem:[%s1 + $0x1cd8] sm:$0xff]
  %v937 = vld [vmem:[%s1 + $0x1ce0] sm:$0xff]
  %v938 = vld [vmem:[%s1 + $0x1ce8] sm:$0xff]
  %v939 = vld [vmem:[%s1 + $0x1cf0] sm:$0xff]
  %v940 = vld [vmem:[%s1 + $0x1cf8] sm:$0xff]
  %v941 = vld [vmem:[%s1 + $0x1d00] sm:$0xff]
  %v942 = vld [vmem:[%s1 + $0x1d08] sm:$0xff]
  %v943 = vld [vmem:[%s1 + $0x1d10] sm:$0xff]
  %v944 = vld [vmem:[%s1 + $0x1d18] sm:$0xff]
  %v945 = vld [vmem:[%s1 + $0x1d20] sm:$0xff]
  %v946 = vld [vmem:[%s1 + $0x1d28] sm:$0xff]
  %v947 = vld [vmem:[%s1 + $0x1d30] sm:$0xff]
  %v948 = vld [vmem:[%s1 + $0x1d38] sm:$0xff]
  %v949 = vld [vmem:[%s1 + $0x1d40] sm:$0xff]
  %v950 = vld [vmem:[%s1 + $0x1d48] sm:$0xff]
  %v951 = vld [vmem:[%s1 + $0x1d50] sm:$0xff]
  %v952 = vld [vmem:[%s1 + $0x1d58] sm:$0xff]
  %v953 = vld [vmem:[%s1 + $0x1d60] sm:$0xff]
  %v954 = vld [vmem:[%s1 + $0x1d68] sm:$0xff]
  %v955 = vld [vmem:[%s1 + $0x1d70] sm:$0xff]
  %v956 = vld [vmem:[%s1 + $0x1d78] sm:$0xff]
  %v957 = vld [vmem:[%s1 + $0x1d80] sm:$0xff]
  %v958 = vld [vmem:[%s1 + $0x1d88] sm:$0xff]
  %v959 = vld [vmem:[%s1 + $0x1d90] sm:$0xff]
  %v960 = vld [vmem:[%s1 + $0x1d98] sm:$0xff]
  %v961 = vld [vmem:[%s1 + $0x1da0] sm:$0xff]
  %v962 = vld [vmem:[%s1 + $0x1da8] sm:$0xff]
  %v963 = vld [vmem:[%s1 + $0x1db0] sm:$0xff]
  %v964 = vld [vmem:[%s1 + $0x1db8] sm:$0xff]
  %v965 = vld [vmem:[%s1 + $0x1dc0] sm:$0xff]
  %v966 = vld [vmem:[%s1 + $0x1dc8] sm:$0xff]
  %v967 = vld [vmem:[%s1 + $0x1dd0] sm:$0xff]
  %v968 = vld [vmem:[%s1 + $0x1dd8] sm:$0xff]
  %v969 = vld [vmem:[%s1 + $0x1de0] sm:$0xff]
  %v970 = vld [vmem:[%s1 + $0x1de8] sm:$0xff]
  %v971 = vld [vmem:[%s1 + $0x1df0] sm:$0xff]
  %v972 = vld [vmem:[%s1 + $0x1df8] sm:$0xff]
  %v973 = vld [vmem:[%s1 + $0x1e00] sm:$0xff]
  %v974 = vld [vmem:[%s1 + $0x1e08] sm:$0xff]
  %v975 = vld [vmem:[%s1 + $0x1e10] sm:$0xff]
  %v976 = vld [vmem:[%s1 + $0x1e18] sm:$0xff]
  %v977 = vld [vmem:[%s1 + $0x1e20] sm:$0xff]
  %v978 = vld [vmem:[%s1 + $0x1e28] sm:$0xff]
  %v979 = vld [vmem:[%s1 + $0x1e30] sm:$0xff]
  %v980 = vld [vmem:[%s1 + $0x1e38] sm:$0xff]
  %v981 = vld [vmem:[%s1 + $0x1e40] sm:$0xff]
  %v982 = vld [vmem:[%s1 + $0x1e48] sm:$0xff]
  %v983 = vld [vmem:[%s1 + $0x1e50] sm:$0xff]
  %v984 = vld [vmem:[%s1 + $0x1e58] sm:$0xff]
  %v985 = vld [vmem:[%s1 + $0x1e60] sm:$0xff]
  %v986 = vld [vmem:[%s1 + $0x1e68] sm:$0xff]
  %v987 = vld [vmem:[%s1 + $0x1e70] sm:$0xff]
  %v988 = vld [vmem:[%s1 + $0x1e78] sm:$0xff]
  %v989 = vld [vmem:[%s1 + $0x1e80] sm:$0xff]
  %v990 = vld [vmem:[%s1 + $0x1e88] sm:$0xff]
  %v991 = vld [vmem:[%s1 + $0x1e90] sm:$0xff]
  %v992 = vld [vmem:[%s1 + $0x1e98] sm:$0xff]
  %v993 = vld [vmem:[%s1 + $0x1ea0] sm:$0xff]
  %v994 = vld [vmem:[%s1 + $0x1ea8] sm:$0xff]
  %v995 = vld [vmem:[%s1 + $0x1eb0] sm:$0xff]
  %v996 = vld [vmem:[%s1 + $0x1eb8] sm:$0xff]
  %v997 = vld [vmem:[%s1 + $0x1ec0] sm:$0xff]
  %v998 = vld [vmem:[%s1 + $0x1ec8] sm:$0xff]
  %v999 = vld [vmem:[%s1 + $0x1ed0] sm:$0xff]
  %v1000 = vld [vmem:[%s1 + $0x1ed8] sm:$0xff]
  %v1001 = vld [vmem:[%s1 + $0x1ee0] sm:$0xff]
  %v1002 = vld [vmem:[%s1 + $0x1ee8] sm:$0xff]
  %v1003 = vld [vmem:[%s1 + $0x1ef0] sm:$0xff]
  %v1004 = vld [vmem:[%s1 + $0x1ef8] sm:$0xff]
  %v1005 = vld [vmem:[%s1 + $0x1f00] sm:$0xff]
  %v1006 = vld [vmem:[%s1 + $0x1f08] sm:$0xff]
  %v1007 = vld [vmem:[%s1 + $0x1f10] sm:$0xff]
  %v1008 = vld [vmem:[%s1 + $0x1f18] sm:$0xff]
  %v1009 = vld [vmem:[%s1 + $0x1f20] sm:$0xff]
  %v1010 = vld [vmem:[%s1 + $0x1f28] sm:$0xff]
  %v1011 = vld [vmem:[%s1 + $0x1f30] sm:$0xff]
  %v1012 = vld [vmem:[%s1 + $0x1f38] sm:$0xff]
  %v1013 = vld [vmem:[%s1 + $0x1f40] sm:$0xff]
  %v1014 = vld [vmem:[%s1 + $0x1f48] sm:$0xff]
  %v1015 = vld [vmem:[%s1 + $0x1f50] sm:$0xff]
  %v1016 = vld [vmem:[%s1 + $0x1f58] sm:$0xff]
  %v1017 = vld [vmem:[%s1 + $0x1f60] sm:$0xff]
  %v1018 = vld [vmem:[%s1 + $0x1f68] sm:$0xff]
  %v1019 = vld [vmem:[%s1 + $0x1f70] sm:$0xff]
  %v1020 = vld [vmem:[%s1 + $0x1f78] sm:$0xff]
  %v1021 = vld [vmem:[%s1 + $0x1f80] sm:$0xff]
  %v1022 = vld [vmem:[%s1 + $0x1f88] sm:$0xff]
  %v1023 = vld [vmem:[%s1 + $0x1f90] sm:$0xff]
  %v1024 = vld [vmem:[%s1 + $0x1f98] sm:$0xff]
  %v1025 = vld [vmem:[%s1 + $0x1fa0] sm:$0xff]
  %v1026 = vld [vmem:[%s1 + $0x1fa8] sm:$0xff]
  %v1027 = vld [vmem:[%s1 + $0x1fb0] sm:$0xff]
  %v1028 = vld [vmem:[%s1 + $0x1fb8] sm:$0xff]
  %v1029 = vld [vmem:[%s1 + $0x1fc0] sm:$0xff]
  %v1030 = vld [vmem:[%s1 + $0x1fc8] sm:$0xff]
  %v1031 = vld [vmem:[%s1 + $0x1fd0] sm:$0xff]
  %v1032 = vld [vmem:[%s1 + $0x1fd8] sm:$0xff]
  %v1033 = vld [vmem:[%s1 + $0x1fe0] sm:$0xff]
  %v1034 = vld [vmem:[%s1 + $0x1fe8] sm:$0xff]
  %v1035 = vld [vmem:[%s1 + $0x1ff0] sm:$0xff]
  %v1036 = vld [vmem:[%s1 + $0x1ff8] sm:$0xff]
  %v1039 = vcombine.high %v11, %v11
  %v1041 = vunpack.c.l.s4 1983009808
  %v1042 = vunpack.c.0.s8 %v1041
  %v1043 = vlaneseq
  %v1044 = vshrl.u32 %v1043, 7
  %v1045 = vsub.s32 %v1042, %v1044
  %v1046 = vrot.slane %v11, %v1045
  %v1048 = vunpack.c.l.s4 1983009808
  %v1049 = vunpack.c.0.s8 %v1048
  %v1050 = vlaneseq
  %v1051 = vshrl.u32 %v1050, 7
  %v1052 = vsub.s32 %v1049, %v1051
  %v1053 = vrot.slane %v1039, %v1052
  %v1054 = vcombine.high %v1046, %v1046
  %v1055 = vcombine.high %v1053, %v1053
  %v1056 = vcombine.high %v12, %v12
  %v1058 = vunpack.c.l.s4 1983009808
  %v1059 = vunpack.c.0.s8 %v1058
  %v1060 = vlaneseq
  %v1061 = vshrl.u32 %v1060, 7
  %v1062 = vsub.s32 %v1059, %v1061
  %v1063 = vrot.slane %v12, %v1062
  %v1065 = vunpack.c.l.s4 1983009808
  %v1066 = vunpack.c.0.s8 %v1065
  %v1067 = vlaneseq
  %v1068 = vshrl.u32 %v1067, 7
  %v1069 = vsub.s32 %v1066, %v1068
  %v1070 = vrot.slane %v1056, %v1069
  %v1071 = vcombine.high %v1063, %v1063
  %v1072 = vcombine.high %v1070, %v1070
  %1081 = vmatprep.subr.mxu0 %v134
  %1082 = vmatpush1.msra.mxu0 %v133
  %1083 = vmatprep.subr.mxu0 %v126
  %1084 = vmatpush1.msra.mxu0 %v125
  %1085 = vmatprep.subr.mxu0 %v118
  %1086 = vmatpush1.msra.mxu0 %v117
  %1087 = vmatprep.subr.mxu0 %v110
  %1088 = vmatpush1.msra.mxu0 %v109
  %1089 = vmatprep.subr.mxu0 %v102
  %1090 = vmatpush1.msra.mxu0 %v101
  %1091 = vmatprep.subr.mxu0 %v94
  %1092 = vmatpush1.msra.mxu0 %v93
  %1093 = vmatprep.subr.mxu0 %v86
  %1094 = vmatpush1.msra.mxu0 %v85
  %1095 = vmatprep.subr.mxu0 %v78
  %1096 = vmatpush1.msra.mxu0 %v77
  %1097 = vmatprep.subr.mxu0 %v70
  %1098 = vmatpush1.msra.mxu0 %v69
  %1099 = vmatprep.subr.mxu0 %v62
  %1100 = vmatpush1.msra.mxu0 %v61
  %1101 = vmatprep.subr.mxu0 %v54
  %1102 = vmatpush1.msra.mxu0 %v53
  %1103 = vmatprep.subr.mxu0 %v46
  %1104 = vmatpush1.msra.mxu0 %v45
  %1105 = vmatprep.subr.mxu0 %v38
  %1106 = vmatpush1.msra.mxu0 %v37
  %1107 = vmatprep.subr.mxu0 %v30
  %1108 = vmatpush1.msra.mxu0 %v29
  %1109 = vmatprep.subr.mxu0 %v22
  %1110 = vmatpush1.msra.mxu0 %v21
  %1111 = vmatprep.subr.mxu0 %v14
  %1112 = vmatpush1.msra.mxu0 %v13
  %1113 = vmatprep.subr.mxu0 %v262
  %1114 = vmatpush2.msra.mxu0 %v261
  %1115 = vmatprep.subr.mxu0 %v254
  %1116 = vmatpush2.msra.mxu0 %v253
  %1117 = vmatprep.subr.mxu0 %v246
  %1118 = vmatpush2.msra.mxu0 %v245
  %1119 = vmatprep.subr.mxu0 %v238
  %1120 = vmatpush2.msra.mxu0 %v237
  %1121 = vmatprep.subr.mxu0 %v230
  %1122 = vmatpush2.msra.mxu0 %v229
  %1123 = vmatprep.subr.mxu0 %v222
  %1124 = vmatpush2.msra.mxu0 %v221
  %1125 = vmatprep.subr.mxu0 %v214
  %1126 = vmatpush2.msra.mxu0 %v213
  %1127 = vmatprep.subr.mxu0 %v206
  %1128 = vmatpush2.msra.mxu0 %v205
  %1129 = vmatprep.subr.mxu0 %v198
  %1130 = vmatpush2.msra.mxu0 %v197
  %1131 = vmatprep.subr.mxu0 %v190
  %1132 = vmatpush2.msra.mxu0 %v189
  %1133 = vmatprep.subr.mxu0 %v182
  %1134 = vmatpush2.msra.mxu0 %v181
  %1135 = vmatprep.subr.mxu0 %v174
  %1136 = vmatpush2.msra.mxu0 %v173
  %1137 = vmatprep.subr.mxu0 %v166
  %1138 = vmatpush2.msra.mxu0 %v165
  %1139 = vmatprep.subr.mxu0 %v158
  %1140 = vmatpush2.msra.mxu0 %v157
  %1141 = vmatprep.subr.mxu0 %v150
  %1142 = vmatpush2.msra.mxu0 %v149
  %1143 = vmatprep.subr.mxu0 %v142
  %1144 = vmatpush2.msra.mxu0 %v141
  %1145 = vmatprep.mubr.f32.mxu0 %v1054
  %1146 = vmatmul.mubr.f32.gmra.mxu0 %v1046
  %v1147 = vpop.f32.mrf.mxu0
  %v1148 = vadd.f32 0.0, %v1147
  %v1149 = vpop.f32.mrf.mxu0
  %v1150 = vadd.f32 0.0, %v1149
  %1151 = vdwg.mxu0
  %1152 = vmatprep.subr.mxu0 %v390
  %1153 = vmatpush1.msra.mxu0 %v389
  %1154 = vmatprep.subr.mxu0 %v382
  %1155 = vmatpush1.msra.mxu0 %v381
  %1156 = vmatprep.subr.mxu0 %v374
  %1157 = vmatpush1.msra.mxu0 %v373
  %1158 = vmatprep.subr.mxu0 %v366
  %1159 = vmatpush1.msra.mxu0 %v365
  %1160 = vmatprep.subr.mxu0 %v358
  %1161 = vmatpush1.msra.mxu0 %v357
  %1162 = vmatprep.subr.mxu0 %v350
  %1163 = vmatpush1.msra.mxu0 %v349
  %1164 = vmatprep.subr.mxu0 %v342
  %1165 = vmatpush1.msra.mxu0 %v341
  %1166 = vmatprep.subr.mxu0 %v334
  %1167 = vmatpush1.msra.mxu0 %v333
  %1168 = vmatprep.subr.mxu0 %v326
  %1169 = vmatpush1.msra.mxu0 %v325
  %1170 = vmatprep.subr.mxu0 %v318
  %1171 = vmatpush1.msra.mxu0 %v317
  %1172 = vmatprep.subr.mxu0 %v310
  %1173 = vmatpush1.msra.mxu0 %v309
  %1174 = vmatprep.subr.mxu0 %v302
  %1175 = vmatpush1.msra.mxu0 %v301
  %1176 = vmatprep.subr.mxu0 %v294
  %1177 = vmatpush1.msra.mxu0 %v293
  %1178 = vmatprep.subr.mxu0 %v286
  %1179 = vmatpush1.msra.mxu0 %v285
  %1180 = vmatprep.subr.mxu0 %v278
  %1181 = vmatpush1.msra.mxu0 %v277
  %1182 = vmatprep.subr.mxu0 %v270
  %1183 = vmatpush1.msra.mxu0 %v269
  %1184 = vmatprep.subr.mxu0 %v518
  %1185 = vmatpush2.msra.mxu0 %v517
  %1186 = vmatprep.subr.mxu0 %v510
  %1187 = vmatpush2.msra.mxu0 %v509
  %1188 = vmatprep.subr.mxu0 %v502
  %1189 = vmatpush2.msra.mxu0 %v501
  %1190 = vmatprep.subr.mxu0 %v494
  %1191 = vmatpush2.msra.mxu0 %v493
  %1192 = vmatprep.subr.mxu0 %v486
  %1193 = vmatpush2.msra.mxu0 %v485
  %1194 = vmatprep.subr.mxu0 %v478
  %1195 = vmatpush2.msra.mxu0 %v477
  %1196 = vmatprep.subr.mxu0 %v470
  %1197 = vmatpush2.msra.mxu0 %v469
  %1198 = vmatprep.subr.mxu0 %v462
  %1199 = vmatpush2.msra.mxu0 %v461
  %1200 = vmatprep.subr.mxu0 %v454
  %1201 = vmatpush2.msra.mxu0 %v453
  %1202 = vmatprep.subr.mxu0 %v446
  %1203 = vmatpush2.msra.mxu0 %v445
  %1204 = vmatprep.subr.mxu0 %v438
  %1205 = vmatpush2.msra.mxu0 %v437
  %1206 = vmatprep.subr.mxu0 %v430
  %1207 = vmatpush2.msra.mxu0 %v429
  %1208 = vmatprep.subr.mxu0 %v422
  %1209 = vmatpush2.msra.mxu0 %v421
  %1210 = vmatprep.subr.mxu0 %v414
  %1211 = vmatpush2.msra.mxu0 %v413
  %1212 = vmatprep.subr.mxu0 %v406
  %1213 = vmatpush2.msra.mxu0 %v405
  %1214 = vmatprep.subr.mxu0 %v398
  %1215 = vmatpush2.msra.mxu0 %v397
  %1216 = vmatprep.mubr.f32.mxu0 %v1055
  %1217 = vmatmul.mubr.f32.gmra.mxu0 %v1053
  %v1218 = vpop.f32.mrf.mxu0
  %v1219 = vadd.f32 %v1148, %v1218
  %v1220 = vpop.f32.mrf.mxu0
  %v1221 = vadd.f32 %v1150, %v1220
  %1222 = vdwg.mxu0
  %1223 = vmatprep.subr.mxu0 %v646
  %1224 = vmatpush1.msra.mxu0 %v645
  %1225 = vmatprep.subr.mxu0 %v638
  %1226 = vmatpush1.msra.mxu0 %v637
  %1227 = vmatprep.subr.mxu0 %v630
  %1228 = vmatpush1.msra.mxu0 %v629
  %1229 = vmatprep.subr.mxu0 %v622
  %1230 = vmatpush1.msra.mxu0 %v621
  %1231 = vmatprep.subr.mxu0 %v614
  %1232 = vmatpush1.msra.mxu0 %v613
  %1233 = vmatprep.subr.mxu0 %v606
  %1234 = vmatpush1.msra.mxu0 %v605
  %1235 = vmatprep.subr.mxu0 %v598
  %1236 = vmatpush1.msra.mxu0 %v597
  %1237 = vmatprep.subr.mxu0 %v590
  %1238 = vmatpush1.msra.mxu0 %v589
  %1239 = vmatprep.subr.mxu0 %v582
  %1240 = vmatpush1.msra.mxu0 %v581
  %1241 = vmatprep.subr.mxu0 %v574
  %1242 = vmatpush1.msra.mxu0 %v573
  %1243 = vmatprep.subr.mxu0 %v566
  %1244 = vmatpush1.msra.mxu0 %v565
  %1245 = vmatprep.subr.mxu0 %v558
  %1246 = vmatpush1.msra.mxu0 %v557
  %1247 = vmatprep.subr.mxu0 %v550
  %1248 = vmatpush1.msra.mxu0 %v549
  %1249 = vmatprep.subr.mxu0 %v542
  %1250 = vmatpush1.msra.mxu0 %v541
  %1251 = vmatprep.subr.mxu0 %v534
  %1252 = vmatpush1.msra.mxu0 %v533
  %1253 = vmatprep.subr.mxu0 %v526
  %1254 = vmatpush1.msra.mxu0 %v525
  %1255 = vmatprep.subr.mxu0 %v774
  %1256 = vmatpush2.msra.mxu0 %v773
  %1257 = vmatprep.subr.mxu0 %v766
  %1258 = vmatpush2.msra.mxu0 %v765
  %1259 = vmatprep.subr.mxu0 %v758
  %1260 = vmatpush2.msra.mxu0 %v757
  %1261 = vmatprep.subr.mxu0 %v750
  %1262 = vmatpush2.msra.mxu0 %v749
  %1263 = vmatprep.subr.mxu0 %v742
  %1264 = vmatpush2.msra.mxu0 %v741
  %1265 = vmatprep.subr.mxu0 %v734
  %1266 = vmatpush2.msra.mxu0 %v733
  %1267 = vmatprep.subr.mxu0 %v726
  %1268 = vmatpush2.msra.mxu0 %v725
  %1269 = vmatprep.subr.mxu0 %v718
  %1270 = vmatpush2.msra.mxu0 %v717
  %1271 = vmatprep.subr.mxu0 %v710
  %1272 = vmatpush2.msra.mxu0 %v709
  %1273 = vmatprep.subr.mxu0 %v702
  %1274 = vmatpush2.msra.mxu0 %v701
  %1275 = vmatprep.subr.mxu0 %v694
  %1276 = vmatpush2.msra.mxu0 %v693
  %1277 = vmatprep.subr.mxu0 %v686
  %1278 = vmatpush2.msra.mxu0 %v685
  %1279 = vmatprep.subr.mxu0 %v678
  %1280 = vmatpush2.msra.mxu0 %v677
  %1281 = vmatprep.subr.mxu0 %v670
  %1282 = vmatpush2.msra.mxu0 %v669
  %1283 = vmatprep.subr.mxu0 %v662
  %1284 = vmatpush2.msra.mxu0 %v661
  %1285 = vmatprep.subr.mxu0 %v654
  %1286 = vmatpush2.msra.mxu0 %v653
  %1287 = vmatprep.mubr.f32.mxu0 %v1071
  %1288 = vmatmul.mubr.f32.gmra.mxu0 %v1063
  %v1289 = vpop.f32.mrf.mxu0
  %v1290 = vadd.f32 %v1219, %v1289
  %v1291 = vpop.f32.mrf.mxu0
  %v1292 = vadd.f32 %v1221, %v1291
  %1293 = vdwg.mxu0
  %1294 = vmatprep.subr.mxu0 %v902
  %1295 = vmatpush1.msra.mxu0 %v901
  %1296 = vmatprep.subr.mxu0 %v894
  %1297 = vmatpush1.msra.mxu0 %v893
  %1298 = vmatprep.subr.mxu0 %v886
  %1299 = vmatpush1.msra.mxu0 %v885
  %1300 = vmatprep.subr.mxu0 %v878
  %1301 = vmatpush1.msra.mxu0 %v877
  %1302 = vmatprep.subr.mxu0 %v870
  %1303 = vmatpush1.msra.mxu0 %v869
  %1304 = vmatprep.subr.mxu0 %v862
  %1305 = vmatpush1.msra.mxu0 %v861
  %1306 = vmatprep.subr.mxu0 %v854
  %1307 = vmatpush1.msra.mxu0 %v853
  %1308 = vmatprep.subr.mxu0 %v846
  %1309 = vmatpush1.msra.mxu0 %v845
  %1310 = vmatprep.subr.mxu0 %v838
  %1311 = vmatpush1.msra.mxu0 %v837
  %1312 = vmatprep.subr.mxu0 %v830
  %1313 = vmatpush1.msra.mxu0 %v829
  %1314 = vmatprep.subr.mxu0 %v822
  %1315 = vmatpush1.msra.mxu0 %v821
  %1316 = vmatprep.subr.mxu0 %v814
  %1317 = vmatpush1.msra.mxu0 %v813
  %1318 = vmatprep.subr.mxu0 %v806
  %1319 = vmatpush1.msra.mxu0 %v805
  %1320 = vmatprep.subr.mxu0 %v798
  %1321 = vmatpush1.msra.mxu0 %v797
  %1322 = vmatprep.subr.mxu0 %v790
  %1323 = vmatpush1.msra.mxu0 %v789
  %1324 = vmatprep.subr.mxu0 %v782
  %1325 = vmatpush1.msra.mxu0 %v781
  %1326 = vmatprep.subr.mxu0 %v1030
  %1327 = vmatpush2.msra.mxu0 %v1029
  %1328 = vmatprep.subr.mxu0 %v1022
  %1329 = vmatpush2.msra.mxu0 %v1021
  %1330 = vmatprep.subr.mxu0 %v1014
  %1331 = vmatpush2.msra.mxu0 %v1013
  %1332 = vmatprep.subr.mxu0 %v1006
  %1333 = vmatpush2.msra.mxu0 %v1005
  %1334 = vmatprep.subr.mxu0 %v998
  %1335 = vmatpush2.msra.mxu0 %v997
  %1336 = vmatprep.subr.mxu0 %v990
  %1337 = vmatpush2.msra.mxu0 %v989
  %1338 = vmatprep.subr.mxu0 %v982
  %1339 = vmatpush2.msra.mxu0 %v981
  %1340 = vmatprep.subr.mxu0 %v974
  %1341 = vmatpush2.msra.mxu0 %v973
  %1342 = vmatprep.subr.mxu0 %v966
  %1343 = vmatpush2.msra.mxu0 %v965
  %1344 = vmatprep.subr.mxu0 %v958
  %1345 = vmatpush2.msra.mxu0 %v957
  %1346 = vmatprep.subr.mxu0 %v950
  %1347 = vmatpush2.msra.mxu0 %v949
  %1348 = vmatprep.subr.mxu0 %v942
  %1349 = vmatpush2.msra.mxu0 %v941
  %1350 = vmatprep.subr.mxu0 %v934
  %1351 = vmatpush2.msra.mxu0 %v933
  %1352 = vmatprep.subr.mxu0 %v926
  %1353 = vmatpush2.msra.mxu0 %v925
  %1354 = vmatprep.subr.mxu0 %v918
  %1355 = vmatpush2.msra.mxu0 %v917
  %1356 = vmatprep.subr.mxu0 %v910
  %1357 = vmatpush2.msra.mxu0 %v909
  %1358 = vmatprep.mubr.f32.mxu0 %v1072
  %1359 = vmatmul.mubr.f32.gmra.mxu0 %v1070
  %v1360 = vpop.f32.mrf.mxu0
  %v1361 = vadd.f32 %v1290, %v1360
  %v1362 = vpop.f32.mrf.mxu0
  %v1363 = vadd.f32 %v1292, %v1362
  %1364 = vdwg.mxu0
  %1365 = vmatprep.subr.mxu0 %v136
  %1366 = vmatpush1.msra.mxu0 %v135
  %1367 = vmatprep.subr.mxu0 %v128
  %1368 = vmatpush1.msra.mxu0 %v127
  %1369 = vmatprep.subr.mxu0 %v120
  %1370 = vmatpush1.msra.mxu0 %v119
  %1371 = vmatprep.subr.mxu0 %v112
  %1372 = vmatpush1.msra.mxu0 %v111
  %1373 = vmatprep.subr.mxu0 %v104
  %1374 = vmatpush1.msra.mxu0 %v103
  %1375 = vmatprep.subr.mxu0 %v96
  %1376 = vmatpush1.msra.mxu0 %v95
  %1377 = vmatprep.subr.mxu0 %v88
  %1378 = vmatpush1.msra.mxu0 %v87
  %1379 = vmatprep.subr.mxu0 %v80
  %1380 = vmatpush1.msra.mxu0 %v79
  %1381 = vmatprep.subr.mxu0 %v72
  %1382 = vmatpush1.msra.mxu0 %v71
  %1383 = vmatprep.subr.mxu0 %v64
  %1384 = vmatpush1.msra.mxu0 %v63
  %1385 = vmatprep.subr.mxu0 %v56
  %1386 = vmatpush1.msra.mxu0 %v55
  %1387 = vmatprep.subr.mxu0 %v48
  %1388 = vmatpush1.msra.mxu0 %v47
  %1389 = vmatprep.subr.mxu0 %v40
  %1390 = vmatpush1.msra.mxu0 %v39
  %1391 = vmatprep.subr.mxu0 %v32
  %1392 = vmatpush1.msra.mxu0 %v31
  %1393 = vmatprep.subr.mxu0 %v24
  %1394 = vmatpush1.msra.mxu0 %v23
  %1395 = vmatprep.subr.mxu0 %v16
  %1396 = vmatpush1.msra.mxu0 %v15
  %1397 = vmatprep.subr.mxu0 %v264
  %1398 = vmatpush2.msra.mxu0 %v263
  %1399 = vmatprep.subr.mxu0 %v256
  %1400 = vmatpush2.msra.mxu0 %v255
  %1401 = vmatprep.subr.mxu0 %v248
  %1402 = vmatpush2.msra.mxu0 %v247
  %1403 = vmatprep.subr.mxu0 %v240
  %1404 = vmatpush2.msra.mxu0 %v239
  %1405 = vmatprep.subr.mxu0 %v232
  %1406 = vmatpush2.msra.mxu0 %v231
  %1407 = vmatprep.subr.mxu0 %v224
  %1408 = vmatpush2.msra.mxu0 %v223
  %1409 = vmatprep.subr.mxu0 %v216
  %1410 = vmatpush2.msra.mxu0 %v215
  %1411 = vmatprep.subr.mxu0 %v208
  %1412 = vmatpush2.msra.mxu0 %v207
  %1413 = vmatprep.subr.mxu0 %v200
  %1414 = vmatpush2.msra.mxu0 %v199
  %1415 = vmatprep.subr.mxu0 %v192
  %1416 = vmatpush2.msra.mxu0 %v191
  %1417 = vmatprep.subr.mxu0 %v184
  %1418 = vmatpush2.msra.mxu0 %v183
  %1419 = vmatprep.subr.mxu0 %v176
  %1420 = vmatpush2.msra.mxu0 %v175
  %1421 = vmatprep.subr.mxu0 %v168
  %1422 = vmatpush2.msra.mxu0 %v167
  %1423 = vmatprep.subr.mxu0 %v160
  %1424 = vmatpush2.msra.mxu0 %v159
  %1425 = vmatprep.subr.mxu0 %v152
  %1426 = vmatpush2.msra.mxu0 %v151
  %1427 = vmatprep.subr.mxu0 %v144
  %1428 = vmatpush2.msra.mxu0 %v143
  %1429 = vmatprep.mubr.f32.mxu0 %v1054
  %1430 = vmatmul.mubr.f32.gmra.mxu0 %v1046
  %v1431 = vpop.f32.mrf.mxu0
  %v1432 = vadd.f32 0.0, %v1431
  %v1433 = vpop.f32.mrf.mxu0
  %v1434 = vadd.f32 0.0, %v1433
  %1435 = vdwg.mxu0
  %1436 = vmatprep.subr.mxu0 %v392
  %1437 = vmatpush1.msra.mxu0 %v391
  %1438 = vmatprep.subr.mxu0 %v384
  %1439 = vmatpush1.msra.mxu0 %v383
  %1440 = vmatprep.subr.mxu0 %v376
  %1441 = vmatpush1.msra.mxu0 %v375
  %1442 = vmatprep.subr.mxu0 %v368
  %1443 = vmatpush1.msra.mxu0 %v367
  %1444 = vmatprep.subr.mxu0 %v360
  %1445 = vmatpush1.msra.mxu0 %v359
  %1446 = vmatprep.subr.mxu0 %v352
  %1447 = vmatpush1.msra.mxu0 %v351
  %1448 = vmatprep.subr.mxu0 %v344
  %1449 = vmatpush1.msra.mxu0 %v343
  %1450 = vmatprep.subr.mxu0 %v336
  %1451 = vmatpush1.msra.mxu0 %v335
  %1452 = vmatprep.subr.mxu0 %v328
  %1453 = vmatpush1.msra.mxu0 %v327
  %1454 = vmatprep.subr.mxu0 %v320
  %1455 = vmatpush1.msra.mxu0 %v319
  %1456 = vmatprep.subr.mxu0 %v312
  %1457 = vmatpush1.msra.mxu0 %v311
  %1458 = vmatprep.subr.mxu0 %v304
  %1459 = vmatpush1.msra.mxu0 %v303
  %1460 = vmatprep.subr.mxu0 %v296
  %1461 = vmatpush1.msra.mxu0 %v295
  %1462 = vmatprep.subr.mxu0 %v288
  %1463 = vmatpush1.msra.mxu0 %v287
  %1464 = vmatprep.subr.mxu0 %v280
  %1465 = vmatpush1.msra.mxu0 %v279
  %1466 = vmatprep.subr.mxu0 %v272
  %1467 = vmatpush1.msra.mxu0 %v271
  %1468 = vmatprep.subr.mxu0 %v520
  %1469 = vmatpush2.msra.mxu0 %v519
  %1470 = vmatprep.subr.mxu0 %v512
  %1471 = vmatpush2.msra.mxu0 %v511
  %1472 = vmatprep.subr.mxu0 %v504
  %1473 = vmatpush2.msra.mxu0 %v503
  %1474 = vmatprep.subr.mxu0 %v496
  %1475 = vmatpush2.msra.mxu0 %v495
  %1476 = vmatprep.subr.mxu0 %v488
  %1477 = vmatpush2.msra.mxu0 %v487
  %1478 = vmatprep.subr.mxu0 %v480
  %1479 = vmatpush2.msra.mxu0 %v479
  %1480 = vmatprep.subr.mxu0 %v472
  %1481 = vmatpush2.msra.mxu0 %v471
  %1482 = vmatprep.subr.mxu0 %v464
  %1483 = vmatpush2.msra.mxu0 %v463
  %1484 = vmatprep.subr.mxu0 %v456
  %1485 = vmatpush2.msra.mxu0 %v455
  %1486 = vmatprep.subr.mxu0 %v448
  %1487 = vmatpush2.msra.mxu0 %v447
  %1488 = vmatprep.subr.mxu0 %v440
  %1489 = vmatpush2.msra.mxu0 %v439
  %1490 = vmatprep.subr.mxu0 %v432
  %1491 = vmatpush2.msra.mxu0 %v431
  %1492 = vmatprep.subr.mxu0 %v424
  %1493 = vmatpush2.msra.mxu0 %v423
  %1494 = vmatprep.subr.mxu0 %v416
  %1495 = vmatpush2.msra.mxu0 %v415
  %1496 = vmatprep.subr.mxu0 %v408
  %1497 = vmatpush2.msra.mxu0 %v407
  %1498 = vmatprep.subr.mxu0 %v400
  %1499 = vmatpush2.msra.mxu0 %v399
  %1500 = vmatprep.mubr.f32.mxu0 %v1055
  %1501 = vmatmul.mubr.f32.gmra.mxu0 %v1053
  %v1502 = vpop.f32.mrf.mxu0
  %v1503 = vadd.f32 %v1432, %v1502
  %v1504 = vpop.f32.mrf.mxu0
  %v1505 = vadd.f32 %v1434, %v1504
  %1506 = vdwg.mxu0
  %1507 = vmatprep.subr.mxu0 %v648
  %1508 = vmatpush1.msra.mxu0 %v647
  %1509 = vmatprep.subr.mxu0 %v640
  %1510 = vmatpush1.msra.mxu0 %v639
  %1511 = vmatprep.subr.mxu0 %v632
  %1512 = vmatpush1.msra.mxu0 %v631
  %1513 = vmatprep.subr.mxu0 %v624
  %1514 = vmatpush1.msra.mxu0 %v623
  %1515 = vmatprep.subr.mxu0 %v616
  %1516 = vmatpush1.msra.mxu0 %v615
  %1517 = vmatprep.subr.mxu0 %v608
  %1518 = vmatpush1.msra.mxu0 %v607
  %1519 = vmatprep.subr.mxu0 %v600
  %1520 = vmatpush1.msra.mxu0 %v599
  %1521 = vmatprep.subr.mxu0 %v592
  %1522 = vmatpush1.msra.mxu0 %v591
  %1523 = vmatprep.subr.mxu0 %v584
  %1524 = vmatpush1.msra.mxu0 %v583
  %1525 = vmatprep.subr.mxu0 %v576
  %1526 = vmatpush1.msra.mxu0 %v575
  %1527 = vmatprep.subr.mxu0 %v568
  %1528 = vmatpush1.msra.mxu0 %v567
  %1529 = vmatprep.subr.mxu0 %v560
  %1530 = vmatpush1.msra.mxu0 %v559
  %1531 = vmatprep.subr.mxu0 %v552
  %1532 = vmatpush1.msra.mxu0 %v551
  %1533 = vmatprep.subr.mxu0 %v544
  %1534 = vmatpush1.msra.mxu0 %v543
  %1535 = vmatprep.subr.mxu0 %v536
  %1536 = vmatpush1.msra.mxu0 %v535
  %1537 = vmatprep.subr.mxu0 %v528
  %1538 = vmatpush1.msra.mxu0 %v527
  %1539 = vmatprep.subr.mxu0 %v776
  %1540 = vmatpush2.msra.mxu0 %v775
  %1541 = vmatprep.subr.mxu0 %v768
  %1542 = vmatpush2.msra.mxu0 %v767
  %1543 = vmatprep.subr.mxu0 %v760
  %1544 = vmatpush2.msra.mxu0 %v759
  %1545 = vmatprep.subr.mxu0 %v752
  %1546 = vmatpush2.msra.mxu0 %v751
  %1547 = vmatprep.subr.mxu0 %v744
  %1548 = vmatpush2.msra.mxu0 %v743
  %1549 = vmatprep.subr.mxu0 %v736
  %1550 = vmatpush2.msra.mxu0 %v735
  %1551 = vmatprep.subr.mxu0 %v728
  %1552 = vmatpush2.msra.mxu0 %v727
  %1553 = vmatprep.subr.mxu0 %v720
  %1554 = vmatpush2.msra.mxu0 %v719
  %1555 = vmatprep.subr.mxu0 %v712
  %1556 = vmatpush2.msra.mxu0 %v711
  %1557 = vmatprep.subr.mxu0 %v704
  %1558 = vmatpush2.msra.mxu0 %v703
  %1559 = vmatprep.subr.mxu0 %v696
  %1560 = vmatpush2.msra.mxu0 %v695
  %1561 = vmatprep.subr.mxu0 %v688
  %1562 = vmatpush2.msra.mxu0 %v687
  %1563 = vmatprep.subr.mxu0 %v680
  %1564 = vmatpush2.msra.mxu0 %v679
  %1565 = vmatprep.subr.mxu0 %v672
  %1566 = vmatpush2.msra.mxu0 %v671
  %1567 = vmatprep.subr.mxu0 %v664
  %1568 = vmatpush2.msra.mxu0 %v663
  %1569 = vmatprep.subr.mxu0 %v656
  %1570 = vmatpush2.msra.mxu0 %v655
  %1571 = vmatprep.mubr.f32.mxu0 %v1071
  %1572 = vmatmul.mubr.f32.gmra.mxu0 %v1063
  %v1573 = vpop.f32.mrf.mxu0
  %v1574 = vadd.f32 %v1503, %v1573
  %v1575 = vpop.f32.mrf.mxu0
  %v1576 = vadd.f32 %v1505, %v1575
  %1577 = vdwg.mxu0
  %1578 = vmatprep.subr.mxu0 %v904
  %1579 = vmatpush1.msra.mxu0 %v903
  %1580 = vmatprep.subr.mxu0 %v896
  %1581 = vmatpush1.msra.mxu0 %v895
  %1582 = vmatprep.subr.mxu0 %v888
  %1583 = vmatpush1.msra.mxu0 %v887
  %1584 = vmatprep.subr.mxu0 %v880
  %1585 = vmatpush1.msra.mxu0 %v879
  %1586 = vmatprep.subr.mxu0 %v872
  %1587 = vmatpush1.msra.mxu0 %v871
  %1588 = vmatprep.subr.mxu0 %v864
  %1589 = vmatpush1.msra.mxu0 %v863
  %1590 = vmatprep.subr.mxu0 %v856
  %1591 = vmatpush1.msra.mxu0 %v855
  %1592 = vmatprep.subr.mxu0 %v848
  %1593 = vmatpush1.msra.mxu0 %v847
  %1594 = vmatprep.subr.mxu0 %v840
  %1595 = vmatpush1.msra.mxu0 %v839
  %1596 = vmatprep.subr.mxu0 %v832
  %1597 = vmatpush1.msra.mxu0 %v831
  %1598 = vmatprep.subr.mxu0 %v824
  %1599 = vmatpush1.msra.mxu0 %v823
  %1600 = vmatprep.subr.mxu0 %v816
  %1601 = vmatpush1.msra.mxu0 %v815
  %1602 = vmatprep.subr.mxu0 %v808
  %1603 = vmatpush1.msra.mxu0 %v807
  %1604 = vmatprep.subr.mxu0 %v800
  %1605 = vmatpush1.msra.mxu0 %v799
  %1606 = vmatprep.subr.mxu0 %v792
  %1607 = vmatpush1.msra.mxu0 %v791
  %1608 = vmatprep.subr.mxu0 %v784
  %1609 = vmatpush1.msra.mxu0 %v783
  %1610 = vmatprep.subr.mxu0 %v1032
  %1611 = vmatpush2.msra.mxu0 %v1031
  %1612 = vmatprep.subr.mxu0 %v1024
  %1613 = vmatpush2.msra.mxu0 %v1023
  %1614 = vmatprep.subr.mxu0 %v1016
  %1615 = vmatpush2.msra.mxu0 %v1015
  %1616 = vmatprep.subr.mxu0 %v1008
  %1617 = vmatpush2.msra.mxu0 %v1007
  %1618 = vmatprep.subr.mxu0 %v1000
  %1619 = vmatpush2.msra.mxu0 %v999
  %1620 = vmatprep.subr.mxu0 %v992
  %1621 = vmatpush2.msra.mxu0 %v991
  %1622 = vmatprep.subr.mxu0 %v984
  %1623 = vmatpush2.msra.mxu0 %v983
  %1624 = vmatprep.subr.mxu0 %v976
  %1625 = vmatpush2.msra.mxu0 %v975
  %1626 = vmatprep.subr.mxu0 %v968
  %1627 = vmatpush2.msra.mxu0 %v967
  %1628 = vmatprep.subr.mxu0 %v960
  %1629 = vmatpush2.msra.mxu0 %v959
  %1630 = vmatprep.subr.mxu0 %v952
  %1631 = vmatpush2.msra.mxu0 %v951
  %1632 = vmatprep.subr.mxu0 %v944
  %1633 = vmatpush2.msra.mxu0 %v943
  %1634 = vmatprep.subr.mxu0 %v936
  %1635 = vmatpush2.msra.mxu0 %v935
  %1636 = vmatprep.subr.mxu0 %v928
  %1637 = vmatpush2.msra.mxu0 %v927
  %1638 = vmatprep.subr.mxu0 %v920
  %1639 = vmatpush2.msra.mxu0 %v919
  %1640 = vmatprep.subr.mxu0 %v912
  %1641 = vmatpush2.msra.mxu0 %v911
  %1642 = vmatprep.mubr.f32.mxu0 %v1072
  %1643 = vmatmul.mubr.f32.gmra.mxu0 %v1070
  %v1644 = vpop.f32.mrf.mxu0
  %v1645 = vadd.f32 %v1574, %v1644
  %v1646 = vpop.f32.mrf.mxu0
  %v1647 = vadd.f32 %v1576, %v1646
  %1648 = vdwg.mxu0
  %1649 = vmatprep.subr.mxu0 %v138
  %1650 = vmatpush1.msra.mxu0 %v137
  %1651 = vmatprep.subr.mxu0 %v130
  %1652 = vmatpush1.msra.mxu0 %v129
  %1653 = vmatprep.subr.mxu0 %v122
  %1654 = vmatpush1.msra.mxu0 %v121
  %1655 = vmatprep.subr.mxu0 %v114
  %1656 = vmatpush1.msra.mxu0 %v113
  %1657 = vmatprep.subr.mxu0 %v106
  %1658 = vmatpush1.msra.mxu0 %v105
  %1659 = vmatprep.subr.mxu0 %v98
  %1660 = vmatpush1.msra.mxu0 %v97
  %1661 = vmatprep.subr.mxu0 %v90
  %1662 = vmatpush1.msra.mxu0 %v89
  %1663 = vmatprep.subr.mxu0 %v82
  %1664 = vmatpush1.msra.mxu0 %v81
  %1665 = vmatprep.subr.mxu0 %v74
  %1666 = vmatpush1.msra.mxu0 %v73
  %1667 = vmatprep.subr.mxu0 %v66
  %1668 = vmatpush1.msra.mxu0 %v65
  %1669 = vmatprep.subr.mxu0 %v58
  %1670 = vmatpush1.msra.mxu0 %v57
  %1671 = vmatprep.subr.mxu0 %v50
  %1672 = vmatpush1.msra.mxu0 %v49
  %1673 = vmatprep.subr.mxu0 %v42
  %1674 = vmatpush1.msra.mxu0 %v41
  %1675 = vmatprep.subr.mxu0 %v34
  %1676 = vmatpush1.msra.mxu0 %v33
  %1677 = vmatprep.subr.mxu0 %v26
  %1678 = vmatpush1.msra.mxu0 %v25
  %1679 = vmatprep.subr.mxu0 %v18
  %1680 = vmatpush1.msra.mxu0 %v17
  %1681 = vmatprep.subr.mxu0 %v266
  %1682 = vmatpush2.msra.mxu0 %v265
  %1683 = vmatprep.subr.mxu0 %v258
  %1684 = vmatpush2.msra.mxu0 %v257
  %1685 = vmatprep.subr.mxu0 %v250
  %1686 = vmatpush2.msra.mxu0 %v249
  %1687 = vmatprep.subr.mxu0 %v242
  %1688 = vmatpush2.msra.mxu0 %v241
  %1689 = vmatprep.subr.mxu0 %v234
  %1690 = vmatpush2.msra.mxu0 %v233
  %1691 = vmatprep.subr.mxu0 %v226
  %1692 = vmatpush2.msra.mxu0 %v225
  %1693 = vmatprep.subr.mxu0 %v218
  %1694 = vmatpush2.msra.mxu0 %v217
  %1695 = vmatprep.subr.mxu0 %v210
  %1696 = vmatpush2.msra.mxu0 %v209
  %1697 = vmatprep.subr.mxu0 %v202
  %1698 = vmatpush2.msra.mxu0 %v201
  %1699 = vmatprep.subr.mxu0 %v194
  %1700 = vmatpush2.msra.mxu0 %v193
  %1701 = vmatprep.subr.mxu0 %v186
  %1702 = vmatpush2.msra.mxu0 %v185
  %1703 = vmatprep.subr.mxu0 %v178
  %1704 = vmatpush2.msra.mxu0 %v177
  %1705 = vmatprep.subr.mxu0 %v170
  %1706 = vmatpush2.msra.mxu0 %v169
  %1707 = vmatprep.subr.mxu0 %v162
  %1708 = vmatpush2.msra.mxu0 %v161
  %1709 = vmatprep.subr.mxu0 %v154
  %1710 = vmatpush2.msra.mxu0 %v153
  %1711 = vmatprep.subr.mxu0 %v146
  %1712 = vmatpush2.msra.mxu0 %v145
  %1713 = vmatprep.mubr.f32.mxu0 %v1054
  %1714 = vmatmul.mubr.f32.gmra.mxu0 %v1046
  %v1715 = vpop.f32.mrf.mxu0
  %v1716 = vadd.f32 0.0, %v1715
  %v1717 = vpop.f32.mrf.mxu0
  %v1718 = vadd.f32 0.0, %v1717
  %1719 = vdwg.mxu0
  %1720 = vmatprep.subr.mxu0 %v394
  %1721 = vmatpush1.msra.mxu0 %v393
  %1722 = vmatprep.subr.mxu0 %v386
  %1723 = vmatpush1.msra.mxu0 %v385
  %1724 = vmatprep.subr.mxu0 %v378
  %1725 = vmatpush1.msra.mxu0 %v377
  %1726 = vmatprep.subr.mxu0 %v370
  %1727 = vmatpush1.msra.mxu0 %v369
  %1728 = vmatprep.subr.mxu0 %v362
  %1729 = vmatpush1.msra.mxu0 %v361
  %1730 = vmatprep.subr.mxu0 %v354
  %1731 = vmatpush1.msra.mxu0 %v353
  %1732 = vmatprep.subr.mxu0 %v346
  %1733 = vmatpush1.msra.mxu0 %v345
  %1734 = vmatprep.subr.mxu0 %v338
  %1735 = vmatpush1.msra.mxu0 %v337
  %1736 = vmatprep.subr.mxu0 %v330
  %1737 = vmatpush1.msra.mxu0 %v329
  %1738 = vmatprep.subr.mxu0 %v322
  %1739 = vmatpush1.msra.mxu0 %v321
  %1740 = vmatprep.subr.mxu0 %v314
  %1741 = vmatpush1.msra.mxu0 %v313
  %1742 = vmatprep.subr.mxu0 %v306
  %1743 = vmatpush1.msra.mxu0 %v305
  %1744 = vmatprep.subr.mxu0 %v298
  %1745 = vmatpush1.msra.mxu0 %v297
  %1746 = vmatprep.subr.mxu0 %v290
  %1747 = vmatpush1.msra.mxu0 %v289
  %1748 = vmatprep.subr.mxu0 %v282
  %1749 = vmatpush1.msra.mxu0 %v281
  %1750 = vmatprep.subr.mxu0 %v274
  %1751 = vmatpush1.msra.mxu0 %v273
  %1752 = vmatprep.subr.mxu0 %v522
  %1753 = vmatpush2.msra.mxu0 %v521
  %1754 = vmatprep.subr.mxu0 %v514
  %1755 = vmatpush2.msra.mxu0 %v513
  %1756 = vmatprep.subr.mxu0 %v506
  %1757 = vmatpush2.msra.mxu0 %v505
  %1758 = vmatprep.subr.mxu0 %v498
  %1759 = vmatpush2.msra.mxu0 %v497
  %1760 = vmatprep.subr.mxu0 %v490
  %1761 = vmatpush2.msra.mxu0 %v489
  %1762 = vmatprep.subr.mxu0 %v482
  %1763 = vmatpush2.msra.mxu0 %v481
  %1764 = vmatprep.subr.mxu0 %v474
  %1765 = vmatpush2.msra.mxu0 %v473
  %1766 = vmatprep.subr.mxu0 %v466
  %1767 = vmatpush2.msra.mxu0 %v465
  %1768 = vmatprep.subr.mxu0 %v458
  %1769 = vmatpush2.msra.mxu0 %v457
  %1770 = vmatprep.subr.mxu0 %v450
  %1771 = vmatpush2.msra.mxu0 %v449
  %1772 = vmatprep.subr.mxu0 %v442
  %1773 = vmatpush2.msra.mxu0 %v441
  %1774 = vmatprep.subr.mxu0 %v434
  %1775 = vmatpush2.msra.mxu0 %v433
  %1776 = vmatprep.subr.mxu0 %v426
  %1777 = vmatpush2.msra.mxu0 %v425
  %1778 = vmatprep.subr.mxu0 %v418
  %1779 = vmatpush2.msra.mxu0 %v417
  %1780 = vmatprep.subr.mxu0 %v410
  %1781 = vmatpush2.msra.mxu0 %v409
  %1782 = vmatprep.subr.mxu0 %v402
  %1783 = vmatpush2.msra.mxu0 %v401
  %1784 = vmatprep.mubr.f32.mxu0 %v1055
  %1785 = vmatmul.mubr.f32.gmra.mxu0 %v1053
  %v1786 = vpop.f32.mrf.mxu0
  %v1787 = vadd.f32 %v1716, %v1786
  %v1788 = vpop.f32.mrf.mxu0
  %v1789 = vadd.f32 %v1718, %v1788
  %1790 = vdwg.mxu0
  %1791 = vmatprep.subr.mxu0 %v650
  %1792 = vmatpush1.msra.mxu0 %v649
  %1793 = vmatprep.subr.mxu0 %v642
  %1794 = vmatpush1.msra.mxu0 %v641
  %1795 = vmatprep.subr.mxu0 %v634
  %1796 = vmatpush1.msra.mxu0 %v633
  %1797 = vmatprep.subr.mxu0 %v626
  %1798 = vmatpush1.msra.mxu0 %v625
  %1799 = vmatprep.subr.mxu0 %v618
  %1800 = vmatpush1.msra.mxu0 %v617
  %1801 = vmatprep.subr.mxu0 %v610
  %1802 = vmatpush1.msra.mxu0 %v609
  %1803 = vmatprep.subr.mxu0 %v602
  %1804 = vmatpush1.msra.mxu0 %v601
  %1805 = vmatprep.subr.mxu0 %v594
  %1806 = vmatpush1.msra.mxu0 %v593
  %1807 = vmatprep.subr.mxu0 %v586
  %1808 = vmatpush1.msra.mxu0 %v585
  %1809 = vmatprep.subr.mxu0 %v578
  %1810 = vmatpush1.msra.mxu0 %v577
  %1811 = vmatprep.subr.mxu0 %v570
  %1812 = vmatpush1.msra.mxu0 %v569
  %1813 = vmatprep.subr.mxu0 %v562
  %1814 = vmatpush1.msra.mxu0 %v561
  %1815 = vmatprep.subr.mxu0 %v554
  %1816 = vmatpush1.msra.mxu0 %v553
  %1817 = vmatprep.subr.mxu0 %v546
  %1818 = vmatpush1.msra.mxu0 %v545
  %1819 = vmatprep.subr.mxu0 %v538
  %1820 = vmatpush1.msra.mxu0 %v537
  %1821 = vmatprep.subr.mxu0 %v530
  %1822 = vmatpush1.msra.mxu0 %v529
  %1823 = vmatprep.subr.mxu0 %v778
  %1824 = vmatpush2.msra.mxu0 %v777
  %1825 = vmatprep.subr.mxu0 %v770
  %1826 = vmatpush2.msra.mxu0 %v769
  %1827 = vmatprep.subr.mxu0 %v762
  %1828 = vmatpush2.msra.mxu0 %v761
  %1829 = vmatprep.subr.mxu0 %v754
  %1830 = vmatpush2.msra.mxu0 %v753
  %1831 = vmatprep.subr.mxu0 %v746
  %1832 = vmatpush2.msra.mxu0 %v745
  %1833 = vmatprep.subr.mxu0 %v738
  %1834 = vmatpush2.msra.mxu0 %v737
  %1835 = vmatprep.subr.mxu0 %v730
  %1836 = vmatpush2.msra.mxu0 %v729
  %1837 = vmatprep.subr.mxu0 %v722
  %1838 = vmatpush2.msra.mxu0 %v721
  %1839 = vmatprep.subr.mxu0 %v714
  %1840 = vmatpush2.msra.mxu0 %v713
  %1841 = vmatprep.subr.mxu0 %v706
  %1842 = vmatpush2.msra.mxu0 %v705
  %1843 = vmatprep.subr.mxu0 %v698
  %1844 = vmatpush2.msra.mxu0 %v697
  %1845 = vmatprep.subr.mxu0 %v690
  %1846 = vmatpush2.msra.mxu0 %v689
  %1847 = vmatprep.subr.mxu0 %v682
  %1848 = vmatpush2.msra.mxu0 %v681
  %1849 = vmatprep.subr.mxu0 %v674
  %1850 = vmatpush2.msra.mxu0 %v673
  %1851 = vmatprep.subr.mxu0 %v666
  %1852 = vmatpush2.msra.mxu0 %v665
  %1853 = vmatprep.subr.mxu0 %v658
  %1854 = vmatpush2.msra.mxu0 %v657
  %1855 = vmatprep.mubr.f32.mxu0 %v1071
  %1856 = vmatmul.mubr.f32.gmra.mxu0 %v1063
  %v1857 = vpop.f32.mrf.mxu0
  %v1858 = vadd.f32 %v1787, %v1857
  %v1859 = vpop.f32.mrf.mxu0
  %v1860 = vadd.f32 %v1789, %v1859
  %1861 = vdwg.mxu0
  %1862 = vmatprep.subr.mxu0 %v906
  %1863 = vmatpush1.msra.mxu0 %v905
  %1864 = vmatprep.subr.mxu0 %v898
  %1865 = vmatpush1.msra.mxu0 %v897
  %1866 = vmatprep.subr.mxu0 %v890
  %1867 = vmatpush1.msra.mxu0 %v889
  %1868 = vmatprep.subr.mxu0 %v882
  %1869 = vmatpush1.msra.mxu0 %v881
  %1870 = vmatprep.subr.mxu0 %v874
  %1871 = vmatpush1.msra.mxu0 %v873
  %1872 = vmatprep.subr.mxu0 %v866
  %1873 = vmatpush1.msra.mxu0 %v865
  %1874 = vmatprep.subr.mxu0 %v858
  %1875 = vmatpush1.msra.mxu0 %v857
  %1876 = vmatprep.subr.mxu0 %v850
  %1877 = vmatpush1.msra.mxu0 %v849
  %1878 = vmatprep.subr.mxu0 %v842
  %1879 = vmatpush1.msra.mxu0 %v841
  %1880 = vmatprep.subr.mxu0 %v834
  %1881 = vmatpush1.msra.mxu0 %v833
  %1882 = vmatprep.subr.mxu0 %v826
  %1883 = vmatpush1.msra.mxu0 %v825
  %1884 = vmatprep.subr.mxu0 %v818
  %1885 = vmatpush1.msra.mxu0 %v817
  %1886 = vmatprep.subr.mxu0 %v810
  %1887 = vmatpush1.msra.mxu0 %v809
  %1888 = vmatprep.subr.mxu0 %v802
  %1889 = vmatpush1.msra.mxu0 %v801
  %1890 = vmatprep.subr.mxu0 %v794
  %1891 = vmatpush1.msra.mxu0 %v793
  %1892 = vmatprep.subr.mxu0 %v786
  %1893 = vmatpush1.msra.mxu0 %v785
  %1894 = vmatprep.subr.mxu0 %v1034
  %1895 = vmatpush2.msra.mxu0 %v1033
  %1896 = vmatprep.subr.mxu0 %v1026
  %1897 = vmatpush2.msra.mxu0 %v1025
  %1898 = vmatprep.subr.mxu0 %v1018
  %1899 = vmatpush2.msra.mxu0 %v1017
  %1900 = vmatprep.subr.mxu0 %v1010
  %1901 = vmatpush2.msra.mxu0 %v1009
  %1902 = vmatprep.subr.mxu0 %v1002
  %1903 = vmatpush2.msra.mxu0 %v1001
  %1904 = vmatprep.subr.mxu0 %v994
  %1905 = vmatpush2.msra.mxu0 %v993
  %1906 = vmatprep.subr.mxu0 %v986
  %1907 = vmatpush2.msra.mxu0 %v985
  %1908 = vmatprep.subr.mxu0 %v978
  %1909 = vmatpush2.msra.mxu0 %v977
  %1910 = vmatprep.subr.mxu0 %v970
  %1911 = vmatpush2.msra.mxu0 %v969
  %1912 = vmatprep.subr.mxu0 %v962
  %1913 = vmatpush2.msra.mxu0 %v961
  %1914 = vmatprep.subr.mxu0 %v954
  %1915 = vmatpush2.msra.mxu0 %v953
  %1916 = vmatprep.subr.mxu0 %v946
  %1917 = vmatpush2.msra.mxu0 %v945
  %1918 = vmatprep.subr.mxu0 %v938
  %1919 = vmatpush2.msra.mxu0 %v937
  %1920 = vmatprep.subr.mxu0 %v930
  %1921 = vmatpush2.msra.mxu0 %v929
  %1922 = vmatprep.subr.mxu0 %v922
  %1923 = vmatpush2.msra.mxu0 %v921
  %1924 = vmatprep.subr.mxu0 %v914
  %1925 = vmatpush2.msra.mxu0 %v913
  %1926 = vmatprep.mubr.f32.mxu0 %v1072
  %1927 = vmatmul.mubr.f32.gmra.mxu0 %v1070
  %v1928 = vpop.f32.mrf.mxu0
  %v1929 = vadd.f32 %v1858, %v1928
  %v1930 = vpop.f32.mrf.mxu0
  %v1931 = vadd.f32 %v1860, %v1930
  %1932 = vdwg.mxu0
  %1933 = vmatprep.subr.mxu0 %v140
  %1934 = vmatpush1.msra.mxu0 %v139
  %1935 = vmatprep.subr.mxu0 %v132
  %1936 = vmatpush1.msra.mxu0 %v131
  %1937 = vmatprep.subr.mxu0 %v124
  %1938 = vmatpush1.msra.mxu0 %v123
  %1939 = vmatprep.subr.mxu0 %v116
  %1940 = vmatpush1.msra.mxu0 %v115
  %1941 = vmatprep.subr.mxu0 %v108
  %1942 = vmatpush1.msra.mxu0 %v107
  %1943 = vmatprep.subr.mxu0 %v100
  %1944 = vmatpush1.msra.mxu0 %v99
  %1945 = vmatprep.subr.mxu0 %v92
  %1946 = vmatpush1.msra.mxu0 %v91
  %1947 = vmatprep.subr.mxu0 %v84
  %1948 = vmatpush1.msra.mxu0 %v83
  %1949 = vmatprep.subr.mxu0 %v76
  %1950 = vmatpush1.msra.mxu0 %v75
  %1951 = vmatprep.subr.mxu0 %v68
  %1952 = vmatpush1.msra.mxu0 %v67
  %1953 = vmatprep.subr.mxu0 %v60
  %1954 = vmatpush1.msra.mxu0 %v59
  %1955 = vmatprep.subr.mxu0 %v52
  %1956 = vmatpush1.msra.mxu0 %v51
  %1957 = vmatprep.subr.mxu0 %v44
  %1958 = vmatpush1.msra.mxu0 %v43
  %1959 = vmatprep.subr.mxu0 %v36
  %1960 = vmatpush1.msra.mxu0 %v35
  %1961 = vmatprep.subr.mxu0 %v28
  %1962 = vmatpush1.msra.mxu0 %v27
  %1963 = vmatprep.subr.mxu0 %v20
  %1964 = vmatpush1.msra.mxu0 %v19
  %1965 = vmatprep.subr.mxu0 %v268
  %1966 = vmatpush2.msra.mxu0 %v267
  %1967 = vmatprep.subr.mxu0 %v260
  %1968 = vmatpush2.msra.mxu0 %v259
  %1969 = vmatprep.subr.mxu0 %v252
  %1970 = vmatpush2.msra.mxu0 %v251
  %1971 = vmatprep.subr.mxu0 %v244
  %1972 = vmatpush2.msra.mxu0 %v243
  %1973 = vmatprep.subr.mxu0 %v236
  %1974 = vmatpush2.msra.mxu0 %v235
  %1975 = vmatprep.subr.mxu0 %v228
  %1976 = vmatpush2.msra.mxu0 %v227
  %1977 = vmatprep.subr.mxu0 %v220
  %1978 = vmatpush2.msra.mxu0 %v219
  %1979 = vmatprep.subr.mxu0 %v212
  %1980 = vmatpush2.msra.mxu0 %v211
  %1981 = vmatprep.subr.mxu0 %v204
  %1982 = vmatpush2.msra.mxu0 %v203
  %1983 = vmatprep.subr.mxu0 %v196
  %1984 = vmatpush2.msra.mxu0 %v195
  %1985 = vmatprep.subr.mxu0 %v188
  %1986 = vmatpush2.msra.mxu0 %v187
  %1987 = vmatprep.subr.mxu0 %v180
  %1988 = vmatpush2.msra.mxu0 %v179
  %1989 = vmatprep.subr.mxu0 %v172
  %1990 = vmatpush2.msra.mxu0 %v171
  %1991 = vmatprep.subr.mxu0 %v164
  %1992 = vmatpush2.msra.mxu0 %v163
  %1993 = vmatprep.subr.mxu0 %v156
  %1994 = vmatpush2.msra.mxu0 %v155
  %1995 = vmatprep.subr.mxu0 %v148
  %1996 = vmatpush2.msra.mxu0 %v147
  %1997 = vmatprep.mubr.f32.mxu0 %v1054
  %1998 = vmatmul.mubr.f32.gmra.mxu0 %v1046
  %v1999 = vpop.f32.mrf.mxu0
  %v2000 = vadd.f32 0.0, %v1999
  %v2001 = vpop.f32.mrf.mxu0
  %v2002 = vadd.f32 0.0, %v2001
  %2003 = vdwg.mxu0
  %2004 = vmatprep.subr.mxu0 %v396
  %2005 = vmatpush1.msra.mxu0 %v395
  %2006 = vmatprep.subr.mxu0 %v388
  %2007 = vmatpush1.msra.mxu0 %v387
  %2008 = vmatprep.subr.mxu0 %v380
  %2009 = vmatpush1.msra.mxu0 %v379
  %2010 = vmatprep.subr.mxu0 %v372
  %2011 = vmatpush1.msra.mxu0 %v371
  %2012 = vmatprep.subr.mxu0 %v364
  %2013 = vmatpush1.msra.mxu0 %v363
  %2014 = vmatprep.subr.mxu0 %v356
  %2015 = vmatpush1.msra.mxu0 %v355
  %2016 = vmatprep.subr.mxu0 %v348
  %2017 = vmatpush1.msra.mxu0 %v347
  %2018 = vmatprep.subr.mxu0 %v340
  %2019 = vmatpush1.msra.mxu0 %v339
  %2020 = vmatprep.subr.mxu0 %v332
  %2021 = vmatpush1.msra.mxu0 %v331
  %2022 = vmatprep.subr.mxu0 %v324
  %2023 = vmatpush1.msra.mxu0 %v323
  %2024 = vmatprep.subr.mxu0 %v316
  %2025 = vmatpush1.msra.mxu0 %v315
  %2026 = vmatprep.subr.mxu0 %v308
  %2027 = vmatpush1.msra.mxu0 %v307
  %2028 = vmatprep.subr.mxu0 %v300
  %2029 = vmatpush1.msra.mxu0 %v299
  %2030 = vmatprep.subr.mxu0 %v292
  %2031 = vmatpush1.msra.mxu0 %v291
  %2032 = vmatprep.subr.mxu0 %v284
  %2033 = vmatpush1.msra.mxu0 %v283
  %2034 = vmatprep.subr.mxu0 %v276
  %2035 = vmatpush1.msra.mxu0 %v275
  %2036 = vmatprep.subr.mxu0 %v524
  %2037 = vmatpush2.msra.mxu0 %v523
  %2038 = vmatprep.subr.mxu0 %v516
  %2039 = vmatpush2.msra.mxu0 %v515
  %2040 = vmatprep.subr.mxu0 %v508
  %2041 = vmatpush2.msra.mxu0 %v507
  %2042 = vmatprep.subr.mxu0 %v500
  %2043 = vmatpush2.msra.mxu0 %v499
  %2044 = vmatprep.subr.mxu0 %v492
  %2045 = vmatpush2.msra.mxu0 %v491
  %2046 = vmatprep.subr.mxu0 %v484
  %2047 = vmatpush2.msra.mxu0 %v483
  %2048 = vmatprep.subr.mxu0 %v476
  %2049 = vmatpush2.msra.mxu0 %v475
  %2050 = vmatprep.subr.mxu0 %v468
  %2051 = vmatpush2.msra.mxu0 %v467
  %2052 = vmatprep.subr.mxu0 %v460
  %2053 = vmatpush2.msra.mxu0 %v459
  %2054 = vmatprep.subr.mxu0 %v452
  %2055 = vmatpush2.msra.mxu0 %v451
  %2056 = vmatprep.subr.mxu0 %v444
  %2057 = vmatpush2.msra.mxu0 %v443
  %2058 = vmatprep.subr.mxu0 %v436
  %2059 = vmatpush2.msra.mxu0 %v435
  %2060 = vmatprep.subr.mxu0 %v428
  %2061 = vmatpush2.msra.mxu0 %v427
  %2062 = vmatprep.subr.mxu0 %v420
  %2063 = vmatpush2.msra.mxu0 %v419
  %2064 = vmatprep.subr.mxu0 %v412
  %2065 = vmatpush2.msra.mxu0 %v411
  %2066 = vmatprep.subr.mxu0 %v404
  %2067 = vmatpush2.msra.mxu0 %v403
  %2068 = vmatprep.mubr.f32.mxu0 %v1055
  %2069 = vmatmul.mubr.f32.gmra.mxu0 %v1053
  %v2070 = vpop.f32.mrf.mxu0
  %v2071 = vadd.f32 %v2000, %v2070
  %v2072 = vpop.f32.mrf.mxu0
  %v2073 = vadd.f32 %v2002, %v2072
  %2074 = vdwg.mxu0
  %2075 = vmatprep.subr.mxu0 %v652
  %2076 = vmatpush1.msra.mxu0 %v651
  %2077 = vmatprep.subr.mxu0 %v644
  %2078 = vmatpush1.msra.mxu0 %v643
  %2079 = vmatprep.subr.mxu0 %v636
  %2080 = vmatpush1.msra.mxu0 %v635
  %2081 = vmatprep.subr.mxu0 %v628
  %2082 = vmatpush1.msra.mxu0 %v627
  %2083 = vmatprep.subr.mxu0 %v620
  %2084 = vmatpush1.msra.mxu0 %v619
  %2085 = vmatprep.subr.mxu0 %v612
  %2086 = vmatpush1.msra.mxu0 %v611
  %2087 = vmatprep.subr.mxu0 %v604
  %2088 = vmatpush1.msra.mxu0 %v603
  %2089 = vmatprep.subr.mxu0 %v596
  %2090 = vmatpush1.msra.mxu0 %v595
  %2091 = vmatprep.subr.mxu0 %v588
  %2092 = vmatpush1.msra.mxu0 %v587
  %2093 = vmatprep.subr.mxu0 %v580
  %2094 = vmatpush1.msra.mxu0 %v579
  %2095 = vmatprep.subr.mxu0 %v572
  %2096 = vmatpush1.msra.mxu0 %v571
  %2097 = vmatprep.subr.mxu0 %v564
  %2098 = vmatpush1.msra.mxu0 %v563
  %2099 = vmatprep.subr.mxu0 %v556
  %2100 = vmatpush1.msra.mxu0 %v555
  %2101 = vmatprep.subr.mxu0 %v548
  %2102 = vmatpush1.msra.mxu0 %v547
  %2103 = vmatprep.subr.mxu0 %v540
  %2104 = vmatpush1.msra.mxu0 %v539
  %2105 = vmatprep.subr.mxu0 %v532
  %2106 = vmatpush1.msra.mxu0 %v531
  %2107 = vmatprep.subr.mxu0 %v780
  %2108 = vmatpush2.msra.mxu0 %v779
  %2109 = vmatprep.subr.mxu0 %v772
  %2110 = vmatpush2.msra.mxu0 %v771
  %2111 = vmatprep.subr.mxu0 %v764
  %2112 = vmatpush2.msra.mxu0 %v763
  %2113 = vmatprep.subr.mxu0 %v756
  %2114 = vmatpush2.msra.mxu0 %v755
  %2115 = vmatprep.subr.mxu0 %v748
  %2116 = vmatpush2.msra.mxu0 %v747
  %2117 = vmatprep.subr.mxu0 %v740
  %2118 = vmatpush2.msra.mxu0 %v739
  %2119 = vmatprep.subr.mxu0 %v732
  %2120 = vmatpush2.msra.mxu0 %v731
  %2121 = vmatprep.subr.mxu0 %v724
  %2122 = vmatpush2.msra.mxu0 %v723
  %2123 = vmatprep.subr.mxu0 %v716
  %2124 = vmatpush2.msra.mxu0 %v715
  %2125 = vmatprep.subr.mxu0 %v708
  %2126 = vmatpush2.msra.mxu0 %v707
  %2127 = vmatprep.subr.mxu0 %v700
  %2128 = vmatpush2.msra.mxu0 %v699
  %2129 = vmatprep.subr.mxu0 %v692
  %2130 = vmatpush2.msra.mxu0 %v691
  %2131 = vmatprep.subr.mxu0 %v684
  %2132 = vmatpush2.msra.mxu0 %v683
  %2133 = vmatprep.subr.mxu0 %v676
  %2134 = vmatpush2.msra.mxu0 %v675
  %2135 = vmatprep.subr.mxu0 %v668
  %2136 = vmatpush2.msra.mxu0 %v667
  %2137 = vmatprep.subr.mxu0 %v660
  %2138 = vmatpush2.msra.mxu0 %v659
  %2139 = vmatprep.mubr.f32.mxu0 %v1071
  %2140 = vmatmul.mubr.f32.gmra.mxu0 %v1063
  %v2141 = vpop.f32.mrf.mxu0
  %v2142 = vadd.f32 %v2071, %v2141
  %v2143 = vpop.f32.mrf.mxu0
  %v2144 = vadd.f32 %v2073, %v2143
  %2145 = vdwg.mxu0
  %2146 = vmatprep.subr.mxu0 %v908
  %2147 = vmatpush1.msra.mxu0 %v907
  %2148 = vmatprep.subr.mxu0 %v900
  %2149 = vmatpush1.msra.mxu0 %v899
  %2150 = vmatprep.subr.mxu0 %v892
  %2151 = vmatpush1.msra.mxu0 %v891
  %2152 = vmatprep.subr.mxu0 %v884
  %2153 = vmatpush1.msra.mxu0 %v883
  %2154 = vmatprep.subr.mxu0 %v876
  %2155 = vmatpush1.msra.mxu0 %v875
  %2156 = vmatprep.subr.mxu0 %v868
  %2157 = vmatpush1.msra.mxu0 %v867
  %2158 = vmatprep.subr.mxu0 %v860
  %2159 = vmatpush1.msra.mxu0 %v859
  %2160 = vmatprep.subr.mxu0 %v852
  %2161 = vmatpush1.msra.mxu0 %v851
  %2162 = vmatprep.subr.mxu0 %v844
  %2163 = vmatpush1.msra.mxu0 %v843
  %2164 = vmatprep.subr.mxu0 %v836
  %2165 = vmatpush1.msra.mxu0 %v835
  %2166 = vmatprep.subr.mxu0 %v828
  %2167 = vmatpush1.msra.mxu0 %v827
  %2168 = vmatprep.subr.mxu0 %v820
  %2169 = vmatpush1.msra.mxu0 %v819
  %2170 = vmatprep.subr.mxu0 %v812
  %2171 = vmatpush1.msra.mxu0 %v811
  %2172 = vmatprep.subr.mxu0 %v804
  %2173 = vmatpush1.msra.mxu0 %v803
  %2174 = vmatprep.subr.mxu0 %v796
  %2175 = vmatpush1.msra.mxu0 %v795
  %2176 = vmatprep.subr.mxu0 %v788
  %2177 = vmatpush1.msra.mxu0 %v787
  %2178 = vmatprep.subr.mxu0 %v1036
  %2179 = vmatpush2.msra.mxu0 %v1035
  %2180 = vmatprep.subr.mxu0 %v1028
  %2181 = vmatpush2.msra.mxu0 %v1027
  %2182 = vmatprep.subr.mxu0 %v1020
  %2183 = vmatpush2.msra.mxu0 %v1019
  %2184 = vmatprep.subr.mxu0 %v1012
  %2185 = vmatpush2.msra.mxu0 %v1011
  %2186 = vmatprep.subr.mxu0 %v1004
  %2187 = vmatpush2.msra.mxu0 %v1003
  %2188 = vmatprep.subr.mxu0 %v996
  %2189 = vmatpush2.msra.mxu0 %v995
  %2190 = vmatprep.subr.mxu0 %v988
  %2191 = vmatpush2.msra.mxu0 %v987
  %2192 = vmatprep.subr.mxu0 %v980
  %2193 = vmatpush2.msra.mxu0 %v979
  %2194 = vmatprep.subr.mxu0 %v972
  %2195 = vmatpush2.msra.mxu0 %v971
  %2196 = vmatprep.subr.mxu0 %v964
  %2197 = vmatpush2.msra.mxu0 %v963
  %2198 = vmatprep.subr.mxu0 %v956
  %2199 = vmatpush2.msra.mxu0 %v955
  %2200 = vmatprep.subr.mxu0 %v948
  %2201 = vmatpush2.msra.mxu0 %v947
  %2202 = vmatprep.subr.mxu0 %v940
  %2203 = vmatpush2.msra.mxu0 %v939
  %2204 = vmatprep.subr.mxu0 %v932
  %2205 = vmatpush2.msra.mxu0 %v931
  %2206 = vmatprep.subr.mxu0 %v924
  %2207 = vmatpush2.msra.mxu0 %v923
  %2208 = vmatprep.subr.mxu0 %v916
  %2209 = vmatpush2.msra.mxu0 %v915
  %2210 = vmatprep.mubr.f32.mxu0 %v1072
  %2211 = vmatmul.mubr.f32.gmra.mxu0 %v1070
  %v2212 = vpop.f32.mrf.mxu0
  %v2213 = vadd.f32 %v2142, %v2212
  %v2214 = vpop.f32.mrf.mxu0
  %v2215 = vadd.f32 %v2144, %v2214
  %2216 = vdwg.mxu0
  %v2217 = vmax.f32 %v1361, 0.0
  %v2218 = vmax.f32 %v1363, 0.0
  %v2219 = vmax.f32 %v1645, 0.0
  %v2220 = vmax.f32 %v1647, 0.0
  %v2221 = vmax.f32 %v1929, 0.0
  %v2222 = vmax.f32 %v1931, 0.0
  %v2223 = vmax.f32 %v2213, 0.0
  %v2224 = vmax.f32 %v2215, 0.0
  %v2225 = vadd.f32 %v2217, %v1046
  %v2226 = vadd.f32 %v2218, %v1054
  %v2227 = vadd.f32 %v2219, %v1053
  %v2228 = vadd.f32 %v2220, %v1055
  %v2229 = vadd.f32 %v2221, %v1063
  %v2230 = vadd.f32 %v2222, %v1071
  %v2231 = vadd.f32 %v2223, %v1070
  %v2232 = vadd.f32 %v2224, %v1072
  %v2241 = vcombine.low %v2225, %v2226
  %v2242 = vcombine.low %v2227, %v2228
  %v2244 = vunpack.c.l.s4 1983009808
  %v2245 = vunpack.c.0.s8 %v2244
  %v2246 = vlaneseq
  %v2247 = vshrl.u32 %v2246, 7
  %v2248 = vsub.s32 %v2245, %v2247
  %v2249 = vrot.slane %v2241, %v2248
  %v2251 = vunpack.c.l.s4 1983009808
  %v2252 = vunpack.c.0.s8 %v2251
  %v2253 = vlaneseq
  %v2254 = vshrl.u32 %v2253, 7
  %v2255 = vsub.s32 %v2252, %v2254
  %v2256 = vrot.slane %v2242, %v2255
  %v2257 = vcombine.low %v2249, %v2256
  %v2258 = vcombine.low %v2229, %v2230
  %v2259 = vcombine.low %v2231, %v2232
  %v2261 = vunpack.c.l.s4 1983009808
  %v2262 = vunpack.c.0.s8 %v2261
  %v2263 = vlaneseq
  %v2264 = vshrl.u32 %v2263, 7
  %v2265 = vsub.s32 %v2262, %v2264
  %v2266 = vrot.slane %v2258, %v2265
  %v2268 = vunpack.c.l.s4 1983009808
  %v2269 = vunpack.c.0.s8 %v2268
  %v2270 = vlaneseq
  %v2271 = vshrl.u32 %v2270, 7
  %v2272 = vsub.s32 %v2269, %v2271
  %v2273 = vrot.slane %v2259, %v2272
  %v2274 = vcombine.low %v2266, %v2273
  %2277 = vst [vmem:[%s2] sm:$0xff] %v2257
  %2278 = vst [vmem:[%s2 + $0x8] sm:$0xff] %v2274
  // Predicated region
  $region10: #{resblock_forward.1} parent=0 // pred_check
    _
  $region11: #{resblock_forward.1} parent=0 // pred_check_branch
    %2280 = sbr.rel (0) target = $region13
  $region12: #{resblock_forward.1} parent=0 // pred_region
    _
  $region13: #{resblock_forward.1} parent=0 // pred_fallthru
    _
  // Predicated region
  $region14: #{resblock_forward.1} parent=0 // pred_check
    _
  $region15: #{resblock_forward.1} parent=0 // pred_check_branch
    %2282 = sbr.rel (0) target = $region17
  $region16: #{resblock_forward.1} parent=0 // pred_region
    _
  $region17: #{resblock_forward.1} parent=0 // pred_fallthru
    _

</llo_original>
